<compile_context>
chip_gen: v7x
topology: tpu7x:2x2x1
jax: 0.10.0
libtpu: 0.0.40
codegen_flags: <defaults>
</compile_context>

<pallas_src>
import functools

import jax
import jax.numpy as jnp
import numpy as np
from jax.experimental import pallas as pl
from jax.experimental.pallas import tpu as pltpu


# ------------------------------ Pallas kernel -------------------------------

def _lane_shift(x, d, q_len):
    """y[:, q] = x[:, (q + d) % q_len] (static circular shift along the lane axis)."""
    s = d % q_len
    if s == 0:
        return x
    return jnp.concatenate([x[:, s:], x[:, :s]], axis=1)


def _fused_unet_up_kernel(pmask_ref, bmask_ref, xnn_ref, skip_ref,
                          upw_ref, upb_ref,
                          w1_ref, b1_ref,
                          w2_ref, b2_ref,
                          o_ref, *, W, Q):
    xnn = xnn_ref[0].astype(jnp.float32)      # (Cin,   Q)  nearest-upsampled inputs0
    skip = skip_ref[0].astype(jnp.float32)    # (Cskip, Q)

    # ---- ConvTranspose2d(k=2, s=2, p=0): 4 phase-masked matmuls (no pixel-shuffle) ----
    upw = upw_ref[...]                        # (4, Cout, Cin), phase index = dy*2 + dx
    Cout = upw.shape[1]
    up = jnp.zeros((Cout, Q), jnp.float32)
    for p in range(4):
        up = up + jnp.dot(upw[p], xnn * pmask_ref[p:p + 1, :],
                          preferred_element_type=jnp.float32)
    up = up + upb_ref[...]                    # (Cout, 1) broadcast; no ReLU here

    # Channel concat done ONCE on the sublane axis -> a single tap matmul per 3x3 tap
    # in conv1 (instead of split up/skip halves doubling the shift/mask/matmul count).
    cat = jnp.concatenate([up, skip], axis=0)             # (Cout + Cskip, Q)

    # ---- 3x3 conv (stride 1, zero pad 1) on flattened spatial: 9 tap matmuls ----
    def conv3x3(x, w, b):
        cout = w.shape[1]
        acc = jnp.zeros((cout, Q), jnp.float32)
        for ky in range(3):
            for kx in range(3):
                t = ky * 3 + kx
                d = (ky - 1) * W + (kx - 1)
                sh = x if d == 0 else _lane_shift(x, d, Q)
                if t != 4:                    # center tap never leaves the image
                    sh = sh * bmask_ref[t:t + 1, :]        # zero-padding via f32 mask
                acc = acc + jnp.dot(w[t], sh, preferred_element_type=jnp.float32)
        return acc + b

    h1 = jnp.maximum(conv3x3(cat, w1_ref[...], b1_ref[...]), 0.0)
    h2 = jnp.maximum(conv3x3(h1, w2_ref[...], b2_ref[...]), 0.0)

    o_ref[0] = h2.astype(o_ref.dtype)


# ------------------------------- JAX wrapper ---------------------------------

def unet_up_coord_forward(inputs0_nchw, skip_nchw, params):
    """unetUpCoord.forward (transpose_conv mode). Inputs/outputs in NCHW."""
    N, Cin, H0, W0 = inputs0_nchw.shape
    Cout = params["up_w"].shape[1]
    Cskip = skip_nchw.shape[1]
    H, W = 2 * H0, 2 * W0
    Q = H * W

    # Nearest-neighbour 2x upsample of inputs0 (cheap prep on the smallest tensor).
    # Combined with the in-kernel phase masks this realizes ConvTranspose2d(k=2, s=2)
    # without any pixel-shuffle / 6-D transpose glue between kernels.
    x_nn = jnp.repeat(jnp.repeat(inputs0_nchw, 2, axis=2), 2, axis=3).reshape(N, Cin, Q)
    skip_f = skip_nchw.reshape(N, Cskip, Q)

    # Static lane masks (tiny, become compile-time constants under jit).
    yy, xx = np.meshgrid(np.arange(H), np.arange(W), indexing="ij")
    yy = yy.reshape(Q)
    xx = xx.reshape(Q)
    pmask = np.stack([((yy % 2) == dy) & ((xx % 2) == dx)
                      for dy in range(2) for dx in range(2)], 0).astype(np.float32)
    bmask = np.stack([(yy + oy >= 0) & (yy + oy < H) & (xx + ox >= 0) & (xx + ox < W)
                      for oy in (-1, 0, 1) for ox in (-1, 0, 1)], 0).astype(np.float32)
    pmask = jnp.asarray(pmask)                             # (4, Q) f32
    bmask = jnp.asarray(bmask)                             # (9, Q) f32

    # Weight repacking (tiny, runs once under jit).
    upw4 = jnp.transpose(params["up_w"], (2, 3, 1, 0)).reshape(4, Cout, Cin)
    upw4 = upw4.astype(jnp.float32)
    upb = params["up_b"].reshape(Cout, 1).astype(jnp.float32)
    w1 = jnp.transpose(params["c1_w"], (2, 3, 0, 1)).reshape(9, Cout, Cout + Cskip)
    w1 = w1.astype(jnp.float32)
    b1 = params["c1_b"].reshape(Cout, 1).astype(jnp.float32)
    w2 = jnp.transpose(params["c2_w"], (2, 3, 0, 1)).reshape(9, Cout, Cout)
    w2 = w2.astype(jnp.float32)
    b2 = params["c2_b"].reshape(Cout, 1).astype(jnp.float32)

    kernel = functools.partial(_fused_unet_up_kernel, W=W, Q=Q)

    out = pl.pallas_call(
        kernel,
        out_shape=jax.ShapeDtypeStruct((N, Cout, Q), inputs0_nchw.dtype),
        grid=(N,),
        in_specs=[
            pl.BlockSpec((4, Q), lambda n: (0, 0)),                    # phase masks
            pl.BlockSpec((9, Q), lambda n: (0, 0)),                    # border masks
            pl.BlockSpec((1, Cin, Q), lambda n: (n, 0, 0)),            # x_nn
            pl.BlockSpec((1, Cskip, Q), lambda n: (n, 0, 0)),          # skip
            pl.BlockSpec((4, Cout, Cin), lambda n: (0, 0, 0)),         # upconv weights
            pl.BlockSpec((Cout, 1), lambda n: (0, 0)),                 # upconv bias
            pl.BlockSpec((9, Cout, Cout + Cskip), lambda n: (0, 0, 0)),# conv1 weight
            pl.BlockSpec((Cout, 1), lambda n: (0, 0)),                 # conv1 bias
            pl.BlockSpec((9, Cout, Cout), lambda n: (0, 0, 0)),        # conv2 weight
            pl.BlockSpec((Cout, 1), lambda n: (0, 0)),                 # conv2 bias
        ],
        out_specs=pl.BlockSpec((1, Cout, Q), lambda n: (n, 0, 0)),
        compiler_params=pltpu.CompilerParams(
            dimension_semantics=("parallel",)),
    )(pmask, bmask, x_nn, skip_f, upw4, upb, w1, b1, w2, b2)

    return out.reshape(N, Cout, H, W)


# ------------------------- numpy reference (checking) ------------------------

def _ref_convT2x2(x, w, b):  # x: (N,Ci,H,W), w: (Ci,Co,2,2)
    N, Ci, H, W = x.shape
    Co = w.shape[1]
    out = np.zeros((N, Co, 2 * H, 2 * W), np.float32)
    for dy in range(2):
        for dx in range(2):
            out[:, :, dy::2, dx::2] = np.einsum("nchw,co->nohw", x, w[:, :, dy, dx])
    return out + b[None, :, None, None]


def _ref_conv3(x, w, b):  # x: (N,Ci,H,W), w: (Co,Ci,3,3)
    N, Ci, H, W = x.shape
    xp = np.pad(x, ((0, 0), (0, 0), (1, 1), (1, 1)))
    out = np.zeros((N, w.shape[0], H, W), np.float32)
    for ky in range(3):
        for kx in range(3):
            out += np.einsum("nchw,oc->nohw", xp[:, :, ky:ky + H, kx:kx + W], w[:, :, ky, kx])
    return out + b[None, :, None, None]


def _ref_forward(x0, skip, p):
    y = _ref_convT2x2(np.asarray(x0), np.asarray(p["up_w"]), np.asarray(p["up_b"]))
    y = np.concatenate([y, np.asarray(skip)], axis=1)
    y = np.maximum(_ref_conv3(y, np.asarray(p["c1_w"]), np.asarray(p["c1_b"])), 0.0)
    y = np.maximum(_ref_conv3(y, np.asarray(p["c2_w"]), np.asarray(p["c2_b"])), 0.0)
    return y


# ------------------------------------ main -----------------------------------

if __name__ == "__main__":
    # Small shapes: in_size=8, out_size=4; inputs0 is (N, in_size, 8, 8),
    # skip is (N, in_size - out_size, 16, 16); output is (N, out_size, 16, 16).
    N, in_size, out_size = 2, 8, 4
    H0 = W0 = 8
    skip_c = in_size - out_size

    key = jax.random.PRNGKey(0)
    ks = jax.random.split(key, 8)

    def kaiming(k, shape, fan_in):
        return (jax.random.normal(k, shape, jnp.float32)
                * jnp.sqrt(2.0 / fan_in)).astype(jnp.float32)

    params = {
        # ConvTranspose2d(in_size, out_size, k=2, s=2): weight (Cin, Cout, 2, 2)
        "up_w": kaiming(ks[0], (in_size, out_size, 2, 2), in_size * 4),
        "up_b": 0.01 * jax.random.normal(ks[1], (out_size,), jnp.float32),
        # Conv2d(in_size, out_size, 3, 1, 1): weight (Cout, Cin, 3, 3)
        "c1_w": kaiming(ks[2], (out_size, in_size, 3, 3), in_size * 9),
        "c1_b": 0.01 * jax.random.normal(ks[3], (out_size,), jnp.float32),
        # Conv2d(out_size, out_size, 3, 1, 1)
        "c2_w": kaiming(ks[4], (out_size, out_size, 3, 3), out_size * 9),
        "c2_b": 0.01 * jax.random.normal(ks[5], (out_size,), jnp.float32),
    }

    inputs0 = jax.random.normal(ks[6], (N, in_size, H0, W0), jnp.float32)
    skip = jax.random.normal(ks[7], (N, skip_c, 2 * H0, 2 * W0), jnp.float32)

    fwd = jax.jit(unet_up_coord_forward)
    out = fwd(inputs0, skip, params)
    out = jax.block_until_ready(out)

    ref = _ref_forward(inputs0, skip, params)
    assert out.shape == (N, out_size, 2 * H0, 2 * W0), out.shape
    np.testing.assert_allclose(np.asarray(out), ref, rtol=1e-4, atol=1e-4)

    print("KERNEL_OK")
</pallas_src>

<mosaic_0001>
module attributes {stable_mosaic.version = 11 : i64} {
  func.func @_fused_unet_up_kernel(%arg0: i32, %arg1: memref<4x256xf32, #tpu.memory_space<vmem>>, %arg2: memref<9x256xf32, #tpu.memory_space<vmem>>, %arg3: memref<1x8x256xf32, #tpu.memory_space<vmem>>, %arg4: memref<1x4x256xf32, #tpu.memory_space<vmem>>, %arg5: memref<4x4x8xf32, #tpu.memory_space<vmem>>, %arg6: memref<4x1xf32, #tpu.memory_space<vmem>>, %arg7: memref<9x4x8xf32, #tpu.memory_space<vmem>>, %arg8: memref<4x1xf32, #tpu.memory_space<vmem>>, %arg9: memref<9x4x4xf32, #tpu.memory_space<vmem>>, %arg10: memref<4x1xf32, #tpu.memory_space<vmem>>, %arg11: memref<1x4x256xf32, #tpu.memory_space<vmem>>) attributes {dimension_semantics = [#tpu.dimension_semantics<parallel>], iteration_bounds = array<i64: 2>, scalar_prefetch = 0 : i64, scratch_operands = 0 : i64, tpu.core_type = #tpu.core_type<tc>, window_params = [{pipeline_mode = #tpu.pipeline_mode<synchronous>, transform_indices = @transform_0, window_bounds = array<i64: 4, 256>}, {pipeline_mode = #tpu.pipeline_mode<synchronous>, transform_indices = @transform_1, window_bounds = array<i64: 9, 256>}, {transform_indices = @transform_2, window_bounds = array<i64: 1, 8, 256>}, {transform_indices = @transform_3, window_bounds = array<i64: 1, 4, 256>}, {pipeline_mode = #tpu.pipeline_mode<synchronous>, transform_indices = @transform_4, window_bounds = array<i64: 4, 4, 8>}, {pipeline_mode = #tpu.pipeline_mode<synchronous>, transform_indices = @transform_5, window_bounds = array<i64: 4, 1>}, {pipeline_mode = #tpu.pipeline_mode<synchronous>, transform_indices = @transform_6, window_bounds = array<i64: 9, 4, 8>}, {pipeline_mode = #tpu.pipeline_mode<synchronous>, transform_indices = @transform_7, window_bounds = array<i64: 4, 1>}, {pipeline_mode = #tpu.pipeline_mode<synchronous>, transform_indices = @transform_8, window_bounds = array<i64: 9, 4, 4>}, {pipeline_mode = #tpu.pipeline_mode<synchronous>, transform_indices = @transform_9, window_bounds = array<i64: 4, 1>}, {transform_indices = @transform_10, window_bounds = array<i64: 1, 4, 256>}]} {
    %c0 = arith.constant 0 : index
    %c0_0 = arith.constant 0 : index
    %c0_1 = arith.constant 0 : index
    %0 = vector.load %arg3[%c0, %c0_0, %c0_1] : memref<1x8x256xf32, #tpu.memory_space<vmem>>, vector<1x8x256xf32>
    %1 = vector.shape_cast %0 : vector<1x8x256xf32> to vector<8x256xf32>
    %c0_2 = arith.constant 0 : index
    %c0_3 = arith.constant 0 : index
    %c0_4 = arith.constant 0 : index
    %2 = vector.load %arg4[%c0_2, %c0_3, %c0_4] : memref<1x4x256xf32, #tpu.memory_space<vmem>>, vector<1x4x256xf32>
    %3 = vector.shape_cast %2 : vector<1x4x256xf32> to vector<4x256xf32>
    %c0_5 = arith.constant 0 : index
    %c0_6 = arith.constant 0 : index
    %c0_7 = arith.constant 0 : index
    %4 = vector.load %arg5[%c0_5, %c0_6, %c0_7] : memref<4x4x8xf32, #tpu.memory_space<vmem>>, vector<4x4x8xf32>
    %cst = arith.constant 0.000000e+00 : f32
    %5 = vector.broadcast %cst : f32 to vector<4x256xf32>
    %6 = vector.extract_strided_slice %4 {offsets = [0, 0, 0], sizes = [1, 4, 8], strides = [1, 1, 1]} : vector<4x4x8xf32> to vector<1x4x8xf32>
    %7 = vector.shape_cast %6 : vector<1x4x8xf32> to vector<4x8xf32>
    %c0_8 = arith.constant 0 : index
    %c0_9 = arith.constant 0 : index
    %8 = vector.load %arg1[%c0_8, %c0_9] : memref<4x256xf32, #tpu.memory_space<vmem>>, vector<1x256xf32>
    %9 = vector.broadcast %8 : vector<1x256xf32> to vector<8x256xf32>
    %10 = arith.mulf %1, %9 : vector<8x256xf32>
    %cst_10 = arith.constant dense<0.000000e+00> : vector<4x256xf32>
    %11 = tpu.matmul %7, %10, %cst_10 {dimension_numbers = #tpu.dot_dimension_numbers<[1], [0], [0], [1], [0, 0, 1, 1], [], []>} : vector<4x8xf32>, vector<8x256xf32>, vector<4x256xf32> -> vector<4x256xf32>
    %12 = arith.addf %5, %11 : vector<4x256xf32>
    %13 = vector.extract_strided_slice %4 {offsets = [1, 0, 0], sizes = [1, 4, 8], strides = [1, 1, 1]} : vector<4x4x8xf32> to vector<1x4x8xf32>
    %14 = vector.shape_cast %13 : vector<1x4x8xf32> to vector<4x8xf32>
    %c1 = arith.constant 1 : index
    %c0_11 = arith.constant 0 : index
    %15 = vector.load %arg1[%c1, %c0_11] : memref<4x256xf32, #tpu.memory_space<vmem>>, vector<1x256xf32>
    %16 = vector.broadcast %15 : vector<1x256xf32> to vector<8x256xf32>
    %17 = arith.mulf %1, %16 : vector<8x256xf32>
    %cst_12 = arith.constant dense<0.000000e+00> : vector<4x256xf32>
    %18 = tpu.matmul %14, %17, %cst_12 {dimension_numbers = #tpu.dot_dimension_numbers<[1], [0], [0], [1], [0, 0, 1, 1], [], []>} : vector<4x8xf32>, vector<8x256xf32>, vector<4x256xf32> -> vector<4x256xf32>
    %19 = arith.addf %12, %18 : vector<4x256xf32>
    %20 = vector.extract_strided_slice %4 {offsets = [2, 0, 0], sizes = [1, 4, 8], strides = [1, 1, 1]} : vector<4x4x8xf32> to vector<1x4x8xf32>
    %21 = vector.shape_cast %20 : vector<1x4x8xf32> to vector<4x8xf32>
    %c2 = arith.constant 2 : index
    %c0_13 = arith.constant 0 : index
    %22 = vector.load %arg1[%c2, %c0_13] : memref<4x256xf32, #tpu.memory_space<vmem>>, vector<1x256xf32>
    %23 = vector.broadcast %22 : vector<1x256xf32> to vector<8x256xf32>
    %24 = arith.mulf %1, %23 : vector<8x256xf32>
    %cst_14 = arith.constant dense<0.000000e+00> : vector<4x256xf32>
    %25 = tpu.matmul %21, %24, %cst_14 {dimension_numbers = #tpu.dot_dimension_numbers<[1], [0], [0], [1], [0, 0, 1, 1], [], []>} : vector<4x8xf32>, vector<8x256xf32>, vector<4x256xf32> -> vector<4x256xf32>
    %26 = arith.addf %19, %25 : vector<4x256xf32>
    %27 = vector.extract_strided_slice %4 {offsets = [3, 0, 0], sizes = [1, 4, 8], strides = [1, 1, 1]} : vector<4x4x8xf32> to vector<1x4x8xf32>
    %28 = vector.shape_cast %27 : vector<1x4x8xf32> to vector<4x8xf32>
    %c3 = arith.constant 3 : index
    %c0_15 = arith.constant 0 : index
    %29 = vector.load %arg1[%c3, %c0_15] : memref<4x256xf32, #tpu.memory_space<vmem>>, vector<1x256xf32>
    %30 = vector.broadcast %29 : vector<1x256xf32> to vector<8x256xf32>
    %31 = arith.mulf %1, %30 : vector<8x256xf32>
    %cst_16 = arith.constant dense<0.000000e+00> : vector<4x256xf32>
    %32 = tpu.matmul %28, %31, %cst_16 {dimension_numbers = #tpu.dot_dimension_numbers<[1], [0], [0], [1], [0, 0, 1, 1], [], []>} : vector<4x8xf32>, vector<8x256xf32>, vector<4x256xf32> -> vector<4x256xf32>
    %33 = arith.addf %26, %32 : vector<4x256xf32>
    %c0_17 = arith.constant 0 : index
    %c0_18 = arith.constant 0 : index
    %34 = vector.load %arg6[%c0_17, %c0_18] : memref<4x1xf32, #tpu.memory_space<vmem>>, vector<4x1xf32>
    %35 = vector.broadcast %34 : vector<4x1xf32> to vector<4x256xf32>
    %36 = arith.addf %33, %35 : vector<4x256xf32>
    %37 = tpu.concatenate %36, %3 in 0 : vector<4x256xf32>, vector<4x256xf32> -> vector<8x256xf32>
    %c0_19 = arith.constant 0 : index
    %c0_20 = arith.constant 0 : index
    %c0_21 = arith.constant 0 : index
    %38 = vector.load %arg7[%c0_19, %c0_20, %c0_21] : memref<9x4x8xf32, #tpu.memory_space<vmem>>, vector<9x4x8xf32>
    %c0_22 = arith.constant 0 : index
    %c0_23 = arith.constant 0 : index
    %39 = vector.load %arg8[%c0_22, %c0_23] : memref<4x1xf32, #tpu.memory_space<vmem>>, vector<4x1xf32>
    %cst_24 = arith.constant 0.000000e+00 : f32
    %40 = vector.broadcast %cst_24 : f32 to vector<4x256xf32>
    %41 = vector.extract_strided_slice %37 {offsets = [0, 239], sizes = [8, 17], strides = [1, 1]} : vector<8x256xf32> to vector<8x17xf32>
    %42 = vector.extract_strided_slice %37 {offsets = [0, 0], sizes = [8, 239], strides = [1, 1]} : vector<8x256xf32> to vector<8x239xf32>
    %43 = tpu.concatenate %41, %42 in 1 : vector<8x17xf32>, vector<8x239xf32> -> vector<8x256xf32>
    %c0_25 = arith.constant 0 : index
    %c0_26 = arith.constant 0 : index
    %44 = vector.load %arg2[%c0_25, %c0_26] : memref<9x256xf32, #tpu.memory_space<vmem>>, vector<1x256xf32>
    %45 = vector.broadcast %44 : vector<1x256xf32> to vector<8x256xf32>
    %46 = arith.mulf %43, %45 : vector<8x256xf32>
    %47 = vector.extract_strided_slice %38 {offsets = [0, 0, 0], sizes = [1, 4, 8], strides = [1, 1, 1]} : vector<9x4x8xf32> to vector<1x4x8xf32>
    %48 = vector.shape_cast %47 : vector<1x4x8xf32> to vector<4x8xf32>
    %cst_27 = arith.constant dense<0.000000e+00> : vector<4x256xf32>
    %49 = tpu.matmul %48, %46, %cst_27 {dimension_numbers = #tpu.dot_dimension_numbers<[1], [0], [0], [1], [0, 0, 1, 1], [], []>} : vector<4x8xf32>, vector<8x256xf32>, vector<4x256xf32> -> vector<4x256xf32>
    %50 = arith.addf %40, %49 : vector<4x256xf32>
    %51 = vector.extract_strided_slice %37 {offsets = [0, 240], sizes = [8, 16], strides = [1, 1]} : vector<8x256xf32> to vector<8x16xf32>
    %52 = vector.extract_strided_slice %37 {offsets = [0, 0], sizes = [8, 240], strides = [1, 1]} : vector<8x256xf32> to vector<8x240xf32>
    %53 = tpu.concatenate %51, %52 in 1 : vector<8x16xf32>, vector<8x240xf32> -> vector<8x256xf32>
    %c1_28 = arith.constant 1 : index
    %c0_29 = arith.constant 0 : index
    %54 = vector.load %arg2[%c1_28, %c0_29] : memref<9x256xf32, #tpu.memory_space<vmem>>, vector<1x256xf32>
    %55 = vector.broadcast %54 : vector<1x256xf32> to vector<8x256xf32>
    %56 = arith.mulf %53, %55 : vector<8x256xf32>
    %57 = vector.extract_strided_slice %38 {offsets = [1, 0, 0], sizes = [1, 4, 8], strides = [1, 1, 1]} : vector<9x4x8xf32> to vector<1x4x8xf32>
    %58 = vector.shape_cast %57 : vector<1x4x8xf32> to vector<4x8xf32>
    %cst_30 = arith.constant dense<0.000000e+00> : vector<4x256xf32>
    %59 = tpu.matmul %58, %56, %cst_30 {dimension_numbers = #tpu.dot_dimension_numbers<[1], [0], [0], [1], [0, 0, 1, 1], [], []>} : vector<4x8xf32>, vector<8x256xf32>, vector<4x256xf32> -> vector<4x256xf32>
    %60 = arith.addf %50, %59 : vector<4x256xf32>
    %61 = vector.extract_strided_slice %37 {offsets = [0, 241], sizes = [8, 15], strides = [1, 1]} : vector<8x256xf32> to vector<8x15xf32>
    %62 = vector.extract_strided_slice %37 {offsets = [0, 0], sizes = [8, 241], strides = [1, 1]} : vector<8x256xf32> to vector<8x241xf32>
    %63 = tpu.concatenate %61, %62 in 1 : vector<8x15xf32>, vector<8x241xf32> -> vector<8x256xf32>
    %c2_31 = arith.constant 2 : index
    %c0_32 = arith.constant 0 : index
    %64 = vector.load %arg2[%c2_31, %c0_32] : memref<9x256xf32, #tpu.memory_space<vmem>>, vector<1x256xf32>
    %65 = vector.broadcast %64 : vector<1x256xf32> to vector<8x256xf32>
    %66 = arith.mulf %63, %65 : vector<8x256xf32>
    %67 = vector.extract_strided_slice %38 {offsets = [2, 0, 0], sizes = [1, 4, 8], strides = [1, 1, 1]} : vector<9x4x8xf32> to vector<1x4x8xf32>
    %68 = vector.shape_cast %67 : vector<1x4x8xf32> to vector<4x8xf32>
    %cst_33 = arith.constant dense<0.000000e+00> : vector<4x256xf32>
    %69 = tpu.matmul %68, %66, %cst_33 {dimension_numbers = #tpu.dot_dimension_numbers<[1], [0], [0], [1], [0, 0, 1, 1], [], []>} : vector<4x8xf32>, vector<8x256xf32>, vector<4x256xf32> -> vector<4x256xf32>
    %70 = arith.addf %60, %69 : vector<4x256xf32>
    %71 = vector.extract_strided_slice %37 {offsets = [0, 255], sizes = [8, 1], strides = [1, 1]} : vector<8x256xf32> to vector<8x1xf32>
    %72 = vector.extract_strided_slice %37 {offsets = [0, 0], sizes = [8, 255], strides = [1, 1]} : vector<8x256xf32> to vector<8x255xf32>
    %73 = tpu.concatenate %71, %72 in 1 : vector<8x1xf32>, vector<8x255xf32> -> vector<8x256xf32>
    %c3_34 = arith.constant 3 : index
    %c0_35 = arith.constant 0 : index
    %74 = vector.load %arg2[%c3_34, %c0_35] : memref<9x256xf32, #tpu.memory_space<vmem>>, vector<1x256xf32>
    %75 = vector.broadcast %74 : vector<1x256xf32> to vector<8x256xf32>
    %76 = arith.mulf %73, %75 : vector<8x256xf32>
    %77 = vector.extract_strided_slice %38 {offsets = [3, 0, 0], sizes = [1, 4, 8], strides = [1, 1, 1]} : vector<9x4x8xf32> to vector<1x4x8xf32>
    %78 = vector.shape_cast %77 : vector<1x4x8xf32> to vector<4x8xf32>
    %cst_36 = arith.constant dense<0.000000e+00> : vector<4x256xf32>
    %79 = tpu.matmul %78, %76, %cst_36 {dimension_numbers = #tpu.dot_dimension_numbers<[1], [0], [0], [1], [0, 0, 1, 1], [], []>} : vector<4x8xf32>, vector<8x256xf32>, vector<4x256xf32> -> vector<4x256xf32>
    %80 = arith.addf %70, %79 : vector<4x256xf32>
    %81 = vector.extract_strided_slice %38 {offsets = [4, 0, 0], sizes = [1, 4, 8], strides = [1, 1, 1]} : vector<9x4x8xf32> to vector<1x4x8xf32>
    %82 = vector.shape_cast %81 : vector<1x4x8xf32> to vector<4x8xf32>
    %cst_37 = arith.constant dense<0.000000e+00> : vector<4x256xf32>
    %83 = tpu.matmul %82, %37, %cst_37 {dimension_numbers = #tpu.dot_dimension_numbers<[1], [0], [0], [1], [0, 0, 1, 1], [], []>} : vector<4x8xf32>, vector<8x256xf32>, vector<4x256xf32> -> vector<4x256xf32>
    %84 = arith.addf %80, %83 : vector<4x256xf32>
    %85 = vector.extract_strided_slice %37 {offsets = [0, 1], sizes = [8, 255], strides = [1, 1]} : vector<8x256xf32> to vector<8x255xf32>
    %86 = vector.extract_strided_slice %37 {offsets = [0, 0], sizes = [8, 1], strides = [1, 1]} : vector<8x256xf32> to vector<8x1xf32>
    %87 = tpu.concatenate %85, %86 in 1 : vector<8x255xf32>, vector<8x1xf32> -> vector<8x256xf32>
    %c5 = arith.constant 5 : index
    %c0_38 = arith.constant 0 : index
    %88 = vector.load %arg2[%c5, %c0_38] : memref<9x256xf32, #tpu.memory_space<vmem>>, vector<1x256xf32>
    %89 = vector.broadcast %88 : vector<1x256xf32> to vector<8x256xf32>
    %90 = arith.mulf %87, %89 : vector<8x256xf32>
    %91 = vector.extract_strided_slice %38 {offsets = [5, 0, 0], sizes = [1, 4, 8], strides = [1, 1, 1]} : vector<9x4x8xf32> to vector<1x4x8xf32>
    %92 = vector.shape_cast %91 : vector<1x4x8xf32> to vector<4x8xf32>
    %cst_39 = arith.constant dense<0.000000e+00> : vector<4x256xf32>
    %93 = tpu.matmul %92, %90, %cst_39 {dimension_numbers = #tpu.dot_dimension_numbers<[1], [0], [0], [1], [0, 0, 1, 1], [], []>} : vector<4x8xf32>, vector<8x256xf32>, vector<4x256xf32> -> vector<4x256xf32>
    %94 = arith.addf %84, %93 : vector<4x256xf32>
    %95 = vector.extract_strided_slice %37 {offsets = [0, 15], sizes = [8, 241], strides = [1, 1]} : vector<8x256xf32> to vector<8x241xf32>
    %96 = vector.extract_strided_slice %37 {offsets = [0, 0], sizes = [8, 15], strides = [1, 1]} : vector<8x256xf32> to vector<8x15xf32>
    %97 = tpu.concatenate %95, %96 in 1 : vector<8x241xf32>, vector<8x15xf32> -> vector<8x256xf32>
    %c6 = arith.constant 6 : index
    %c0_40 = arith.constant 0 : index
    %98 = vector.load %arg2[%c6, %c0_40] : memref<9x256xf32, #tpu.memory_space<vmem>>, vector<1x256xf32>
    %99 = vector.broadcast %98 : vector<1x256xf32> to vector<8x256xf32>
    %100 = arith.mulf %97, %99 : vector<8x256xf32>
    %101 = vector.extract_strided_slice %38 {offsets = [6, 0, 0], sizes = [1, 4, 8], strides = [1, 1, 1]} : vector<9x4x8xf32> to vector<1x4x8xf32>
    %102 = vector.shape_cast %101 : vector<1x4x8xf32> to vector<4x8xf32>
    %cst_41 = arith.constant dense<0.000000e+00> : vector<4x256xf32>
    %103 = tpu.matmul %102, %100, %cst_41 {dimension_numbers = #tpu.dot_dimension_numbers<[1], [0], [0], [1], [0, 0, 1, 1], [], []>} : vector<4x8xf32>, vector<8x256xf32>, vector<4x256xf32> -> vector<4x256xf32>
    %104 = arith.addf %94, %103 : vector<4x256xf32>
    %105 = vector.extract_strided_slice %37 {offsets = [0, 16], sizes = [8, 240], strides = [1, 1]} : vector<8x256xf32> to vector<8x240xf32>
    %106 = vector.extract_strided_slice %37 {offsets = [0, 0], sizes = [8, 16], strides = [1, 1]} : vector<8x256xf32> to vector<8x16xf32>
    %107 = tpu.concatenate %105, %106 in 1 : vector<8x240xf32>, vector<8x16xf32> -> vector<8x256xf32>
    %c7 = arith.constant 7 : index
    %c0_42 = arith.constant 0 : index
    %108 = vector.load %arg2[%c7, %c0_42] : memref<9x256xf32, #tpu.memory_space<vmem>>, vector<1x256xf32>
    %109 = vector.broadcast %108 : vector<1x256xf32> to vector<8x256xf32>
    %110 = arith.mulf %107, %109 : vector<8x256xf32>
    %111 = vector.extract_strided_slice %38 {offsets = [7, 0, 0], sizes = [1, 4, 8], strides = [1, 1, 1]} : vector<9x4x8xf32> to vector<1x4x8xf32>
    %112 = vector.shape_cast %111 : vector<1x4x8xf32> to vector<4x8xf32>
    %cst_43 = arith.constant dense<0.000000e+00> : vector<4x256xf32>
    %113 = tpu.matmul %112, %110, %cst_43 {dimension_numbers = #tpu.dot_dimension_numbers<[1], [0], [0], [1], [0, 0, 1, 1], [], []>} : vector<4x8xf32>, vector<8x256xf32>, vector<4x256xf32> -> vector<4x256xf32>
    %114 = arith.addf %104, %113 : vector<4x256xf32>
    %115 = vector.extract_strided_slice %37 {offsets = [0, 17], sizes = [8, 239], strides = [1, 1]} : vector<8x256xf32> to vector<8x239xf32>
    %116 = vector.extract_strided_slice %37 {offsets = [0, 0], sizes = [8, 17], strides = [1, 1]} : vector<8x256xf32> to vector<8x17xf32>
    %117 = tpu.concatenate %115, %116 in 1 : vector<8x239xf32>, vector<8x17xf32> -> vector<8x256xf32>
    %c8 = arith.constant 8 : index
    %c0_44 = arith.constant 0 : index
    %118 = vector.load %arg2[%c8, %c0_44] : memref<9x256xf32, #tpu.memory_space<vmem>>, vector<1x256xf32>
    %119 = vector.broadcast %118 : vector<1x256xf32> to vector<8x256xf32>
    %120 = arith.mulf %117, %119 : vector<8x256xf32>
    %121 = vector.extract_strided_slice %38 {offsets = [8, 0, 0], sizes = [1, 4, 8], strides = [1, 1, 1]} : vector<9x4x8xf32> to vector<1x4x8xf32>
    %122 = vector.shape_cast %121 : vector<1x4x8xf32> to vector<4x8xf32>
    %cst_45 = arith.constant dense<0.000000e+00> : vector<4x256xf32>
    %123 = tpu.matmul %122, %120, %cst_45 {dimension_numbers = #tpu.dot_dimension_numbers<[1], [0], [0], [1], [0, 0, 1, 1], [], []>} : vector<4x8xf32>, vector<8x256xf32>, vector<4x256xf32> -> vector<4x256xf32>
    %124 = arith.addf %114, %123 : vector<4x256xf32>
    %125 = vector.broadcast %39 : vector<4x1xf32> to vector<4x256xf32>
    %126 = arith.addf %124, %125 : vector<4x256xf32>
    %cst_46 = arith.constant 0.000000e+00 : f32
    %127 = vector.broadcast %cst_46 : f32 to vector<4x256xf32>
    %128 = arith.maximumf %126, %127 : vector<4x256xf32>
    %c0_47 = arith.constant 0 : index
    %c0_48 = arith.constant 0 : index
    %c0_49 = arith.constant 0 : index
    %129 = vector.load %arg9[%c0_47, %c0_48, %c0_49] : memref<9x4x4xf32, #tpu.memory_space<vmem>>, vector<9x4x4xf32>
    %c0_50 = arith.constant 0 : index
    %c0_51 = arith.constant 0 : index
    %130 = vector.load %arg10[%c0_50, %c0_51] : memref<4x1xf32, #tpu.memory_space<vmem>>, vector<4x1xf32>
    %cst_52 = arith.constant 0.000000e+00 : f32
    %131 = vector.broadcast %cst_52 : f32 to vector<4x256xf32>
    %132 = vector.extract_strided_slice %128 {offsets = [0, 239], sizes = [4, 17], strides = [1, 1]} : vector<4x256xf32> to vector<4x17xf32>
    %133 = vector.extract_strided_slice %128 {offsets = [0, 0], sizes = [4, 239], strides = [1, 1]} : vector<4x256xf32> to vector<4x239xf32>
    %134 = tpu.concatenate %132, %133 in 1 : vector<4x17xf32>, vector<4x239xf32> -> vector<4x256xf32>
    %c0_53 = arith.constant 0 : index
    %c0_54 = arith.constant 0 : index
    %135 = vector.load %arg2[%c0_53, %c0_54] : memref<9x256xf32, #tpu.memory_space<vmem>>, vector<1x256xf32>
    %136 = vector.broadcast %135 : vector<1x256xf32> to vector<4x256xf32>
    %137 = arith.mulf %134, %136 : vector<4x256xf32>
    %138 = vector.extract_strided_slice %129 {offsets = [0, 0, 0], sizes = [1, 4, 4], strides = [1, 1, 1]} : vector<9x4x4xf32> to vector<1x4x4xf32>
    %139 = vector.shape_cast %138 : vector<1x4x4xf32> to vector<4x4xf32>
    %cst_55 = arith.constant dense<0.000000e+00> : vector<4x256xf32>
    %140 = tpu.matmul %139, %137, %cst_55 {dimension_numbers = #tpu.dot_dimension_numbers<[1], [0], [0], [1], [0, 0, 1, 1], [], []>} : vector<4x4xf32>, vector<4x256xf32>, vector<4x256xf32> -> vector<4x256xf32>
    %141 = arith.addf %131, %140 : vector<4x256xf32>
    %142 = vector.extract_strided_slice %128 {offsets = [0, 240], sizes = [4, 16], strides = [1, 1]} : vector<4x256xf32> to vector<4x16xf32>
    %143 = vector.extract_strided_slice %128 {offsets = [0, 0], sizes = [4, 240], strides = [1, 1]} : vector<4x256xf32> to vector<4x240xf32>
    %144 = tpu.concatenate %142, %143 in 1 : vector<4x16xf32>, vector<4x240xf32> -> vector<4x256xf32>
    %c1_56 = arith.constant 1 : index
    %c0_57 = arith.constant 0 : index
    %145 = vector.load %arg2[%c1_56, %c0_57] : memref<9x256xf32, #tpu.memory_space<vmem>>, vector<1x256xf32>
    %146 = vector.broadcast %145 : vector<1x256xf32> to vector<4x256xf32>
    %147 = arith.mulf %144, %146 : vector<4x256xf32>
    %148 = vector.extract_strided_slice %129 {offsets = [1, 0, 0], sizes = [1, 4, 4], strides = [1, 1, 1]} : vector<9x4x4xf32> to vector<1x4x4xf32>
    %149 = vector.shape_cast %148 : vector<1x4x4xf32> to vector<4x4xf32>
    %cst_58 = arith.constant dense<0.000000e+00> : vector<4x256xf32>
    %150 = tpu.matmul %149, %147, %cst_58 {dimension_numbers = #tpu.dot_dimension_numbers<[1], [0], [0], [1], [0, 0, 1, 1], [], []>} : vector<4x4xf32>, vector<4x256xf32>, vector<4x256xf32> -> vector<4x256xf32>
    %151 = arith.addf %141, %150 : vector<4x256xf32>
    %152 = vector.extract_strided_slice %128 {offsets = [0, 241], sizes = [4, 15], strides = [1, 1]} : vector<4x256xf32> to vector<4x15xf32>
    %153 = vector.extract_strided_slice %128 {offsets = [0, 0], sizes = [4, 241], strides = [1, 1]} : vector<4x256xf32> to vector<4x241xf32>
    %154 = tpu.concatenate %152, %153 in 1 : vector<4x15xf32>, vector<4x241xf32> -> vector<4x256xf32>
    %c2_59 = arith.constant 2 : index
    %c0_60 = arith.constant 0 : index
    %155 = vector.load %arg2[%c2_59, %c0_60] : memref<9x256xf32, #tpu.memory_space<vmem>>, vector<1x256xf32>
    %156 = vector.broadcast %155 : vector<1x256xf32> to vector<4x256xf32>
    %157 = arith.mulf %154, %156 : vector<4x256xf32>
    %158 = vector.extract_strided_slice %129 {offsets = [2, 0, 0], sizes = [1, 4, 4], strides = [1, 1, 1]} : vector<9x4x4xf32> to vector<1x4x4xf32>
    %159 = vector.shape_cast %158 : vector<1x4x4xf32> to vector<4x4xf32>
    %cst_61 = arith.constant dense<0.000000e+00> : vector<4x256xf32>
    %160 = tpu.matmul %159, %157, %cst_61 {dimension_numbers = #tpu.dot_dimension_numbers<[1], [0], [0], [1], [0, 0, 1, 1], [], []>} : vector<4x4xf32>, vector<4x256xf32>, vector<4x256xf32> -> vector<4x256xf32>
    %161 = arith.addf %151, %160 : vector<4x256xf32>
    %162 = vector.extract_strided_slice %128 {offsets = [0, 255], sizes = [4, 1], strides = [1, 1]} : vector<4x256xf32> to vector<4x1xf32>
    %163 = vector.extract_strided_slice %128 {offsets = [0, 0], sizes = [4, 255], strides = [1, 1]} : vector<4x256xf32> to vector<4x255xf32>
    %164 = tpu.concatenate %162, %163 in 1 : vector<4x1xf32>, vector<4x255xf32> -> vector<4x256xf32>
    %c3_62 = arith.constant 3 : index
    %c0_63 = arith.constant 0 : index
    %165 = vector.load %arg2[%c3_62, %c0_63] : memref<9x256xf32, #tpu.memory_space<vmem>>, vector<1x256xf32>
    %166 = vector.broadcast %165 : vector<1x256xf32> to vector<4x256xf32>
    %167 = arith.mulf %164, %166 : vector<4x256xf32>
    %168 = vector.extract_strided_slice %129 {offsets = [3, 0, 0], sizes = [1, 4, 4], strides = [1, 1, 1]} : vector<9x4x4xf32> to vector<1x4x4xf32>
    %169 = vector.shape_cast %168 : vector<1x4x4xf32> to vector<4x4xf32>
    %cst_64 = arith.constant dense<0.000000e+00> : vector<4x256xf32>
    %170 = tpu.matmul %169, %167, %cst_64 {dimension_numbers = #tpu.dot_dimension_numbers<[1], [0], [0], [1], [0, 0, 1, 1], [], []>} : vector<4x4xf32>, vector<4x256xf32>, vector<4x256xf32> -> vector<4x256xf32>
    %171 = arith.addf %161, %170 : vector<4x256xf32>
    %172 = vector.extract_strided_slice %129 {offsets = [4, 0, 0], sizes = [1, 4, 4], strides = [1, 1, 1]} : vector<9x4x4xf32> to vector<1x4x4xf32>
    %173 = vector.shape_cast %172 : vector<1x4x4xf32> to vector<4x4xf32>
    %cst_65 = arith.constant dense<0.000000e+00> : vector<4x256xf32>
    %174 = tpu.matmul %173, %128, %cst_65 {dimension_numbers = #tpu.dot_dimension_numbers<[1], [0], [0], [1], [0, 0, 1, 1], [], []>} : vector<4x4xf32>, vector<4x256xf32>, vector<4x256xf32> -> vector<4x256xf32>
    %175 = arith.addf %171, %174 : vector<4x256xf32>
    %176 = vector.extract_strided_slice %128 {offsets = [0, 1], sizes = [4, 255], strides = [1, 1]} : vector<4x256xf32> to vector<4x255xf32>
    %177 = vector.extract_strided_slice %128 {offsets = [0, 0], sizes = [4, 1], strides = [1, 1]} : vector<4x256xf32> to vector<4x1xf32>
    %178 = tpu.concatenate %176, %177 in 1 : vector<4x255xf32>, vector<4x1xf32> -> vector<4x256xf32>
    %c5_66 = arith.constant 5 : index
    %c0_67 = arith.constant 0 : index
    %179 = vector.load %arg2[%c5_66, %c0_67] : memref<9x256xf32, #tpu.memory_space<vmem>>, vector<1x256xf32>
    %180 = vector.broadcast %179 : vector<1x256xf32> to vector<4x256xf32>
    %181 = arith.mulf %178, %180 : vector<4x256xf32>
    %182 = vector.extract_strided_slice %129 {offsets = [5, 0, 0], sizes = [1, 4, 4], strides = [1, 1, 1]} : vector<9x4x4xf32> to vector<1x4x4xf32>
    %183 = vector.shape_cast %182 : vector<1x4x4xf32> to vector<4x4xf32>
    %cst_68 = arith.constant dense<0.000000e+00> : vector<4x256xf32>
    %184 = tpu.matmul %183, %181, %cst_68 {dimension_numbers = #tpu.dot_dimension_numbers<[1], [0], [0], [1], [0, 0, 1, 1], [], []>} : vector<4x4xf32>, vector<4x256xf32>, vector<4x256xf32> -> vector<4x256xf32>
    %185 = arith.addf %175, %184 : vector<4x256xf32>
    %186 = vector.extract_strided_slice %128 {offsets = [0, 15], sizes = [4, 241], strides = [1, 1]} : vector<4x256xf32> to vector<4x241xf32>
    %187 = vector.extract_strided_slice %128 {offsets = [0, 0], sizes = [4, 15], strides = [1, 1]} : vector<4x256xf32> to vector<4x15xf32>
    %188 = tpu.concatenate %186, %187 in 1 : vector<4x241xf32>, vector<4x15xf32> -> vector<4x256xf32>
    %c6_69 = arith.constant 6 : index
    %c0_70 = arith.constant 0 : index
    %189 = vector.load %arg2[%c6_69, %c0_70] : memref<9x256xf32, #tpu.memory_space<vmem>>, vector<1x256xf32>
    %190 = vector.broadcast %189 : vector<1x256xf32> to vector<4x256xf32>
    %191 = arith.mulf %188, %190 : vector<4x256xf32>
    %192 = vector.extract_strided_slice %129 {offsets = [6, 0, 0], sizes = [1, 4, 4], strides = [1, 1, 1]} : vector<9x4x4xf32> to vector<1x4x4xf32>
    %193 = vector.shape_cast %192 : vector<1x4x4xf32> to vector<4x4xf32>
    %cst_71 = arith.constant dense<0.000000e+00> : vector<4x256xf32>
    %194 = tpu.matmul %193, %191, %cst_71 {dimension_numbers = #tpu.dot_dimension_numbers<[1], [0], [0], [1], [0, 0, 1, 1], [], []>} : vector<4x4xf32>, vector<4x256xf32>, vector<4x256xf32> -> vector<4x256xf32>
    %195 = arith.addf %185, %194 : vector<4x256xf32>
    %196 = vector.extract_strided_slice %128 {offsets = [0, 16], sizes = [4, 240], strides = [1, 1]} : vector<4x256xf32> to vector<4x240xf32>
    %197 = vector.extract_strided_slice %128 {offsets = [0, 0], sizes = [4, 16], strides = [1, 1]} : vector<4x256xf32> to vector<4x16xf32>
    %198 = tpu.concatenate %196, %197 in 1 : vector<4x240xf32>, vector<4x16xf32> -> vector<4x256xf32>
    %c7_72 = arith.constant 7 : index
    %c0_73 = arith.constant 0 : index
    %199 = vector.load %arg2[%c7_72, %c0_73] : memref<9x256xf32, #tpu.memory_space<vmem>>, vector<1x256xf32>
    %200 = vector.broadcast %199 : vector<1x256xf32> to vector<4x256xf32>
    %201 = arith.mulf %198, %200 : vector<4x256xf32>
    %202 = vector.extract_strided_slice %129 {offsets = [7, 0, 0], sizes = [1, 4, 4], strides = [1, 1, 1]} : vector<9x4x4xf32> to vector<1x4x4xf32>
    %203 = vector.shape_cast %202 : vector<1x4x4xf32> to vector<4x4xf32>
    %cst_74 = arith.constant dense<0.000000e+00> : vector<4x256xf32>
    %204 = tpu.matmul %203, %201, %cst_74 {dimension_numbers = #tpu.dot_dimension_numbers<[1], [0], [0], [1], [0, 0, 1, 1], [], []>} : vector<4x4xf32>, vector<4x256xf32>, vector<4x256xf32> -> vector<4x256xf32>
    %205 = arith.addf %195, %204 : vector<4x256xf32>
    %206 = vector.extract_strided_slice %128 {offsets = [0, 17], sizes = [4, 239], strides = [1, 1]} : vector<4x256xf32> to vector<4x239xf32>
    %207 = vector.extract_strided_slice %128 {offsets = [0, 0], sizes = [4, 17], strides = [1, 1]} : vector<4x256xf32> to vector<4x17xf32>
    %208 = tpu.concatenate %206, %207 in 1 : vector<4x239xf32>, vector<4x17xf32> -> vector<4x256xf32>
    %c8_75 = arith.constant 8 : index
    %c0_76 = arith.constant 0 : index
    %209 = vector.load %arg2[%c8_75, %c0_76] : memref<9x256xf32, #tpu.memory_space<vmem>>, vector<1x256xf32>
    %210 = vector.broadcast %209 : vector<1x256xf32> to vector<4x256xf32>
    %211 = arith.mulf %208, %210 : vector<4x256xf32>
    %212 = vector.extract_strided_slice %129 {offsets = [8, 0, 0], sizes = [1, 4, 4], strides = [1, 1, 1]} : vector<9x4x4xf32> to vector<1x4x4xf32>
    %213 = vector.shape_cast %212 : vector<1x4x4xf32> to vector<4x4xf32>
    %cst_77 = arith.constant dense<0.000000e+00> : vector<4x256xf32>
    %214 = tpu.matmul %213, %211, %cst_77 {dimension_numbers = #tpu.dot_dimension_numbers<[1], [0], [0], [1], [0, 0, 1, 1], [], []>} : vector<4x4xf32>, vector<4x256xf32>, vector<4x256xf32> -> vector<4x256xf32>
    %215 = arith.addf %205, %214 : vector<4x256xf32>
    %216 = vector.broadcast %130 : vector<4x1xf32> to vector<4x256xf32>
    %217 = arith.addf %215, %216 : vector<4x256xf32>
    %cst_78 = arith.constant 0.000000e+00 : f32
    %218 = vector.broadcast %cst_78 : f32 to vector<4x256xf32>
    %219 = arith.maximumf %217, %218 : vector<4x256xf32>
    %c0_79 = arith.constant 0 : index
    %c0_80 = arith.constant 0 : index
    %c0_81 = arith.constant 0 : index
    %220 = vector.load %arg11[%c0_79, %c0_80, %c0_81] : memref<1x4x256xf32, #tpu.memory_space<vmem>>, vector<1x4x256xf32>
    %221 = vector.shape_cast %220 : vector<1x4x256xf32> to vector<4x256xf32>
    %222 = vector.shape_cast %219 : vector<4x256xf32> to vector<1x4x256xf32>
    tpu.vector_store %arg11[%c0_79, %c0_80, %c0_81], %222 {strides = array<i32>} : memref<1x4x256xf32, #tpu.memory_space<vmem>>, vector<1x4x256xf32>,
    return
  }
  func.func @transform_0(%arg0: i32) -> (i32, i32) {
    %c0_i32 = arith.constant 0 : i32
    %c0_i32_0 = arith.constant 0 : i32
    %c0_i32_1 = arith.constant 0 : i32
    return %c0_i32, %c0_i32_0 : i32, i32
  }
  func.func @transform_1(%arg0: i32) -> (i32, i32) {
    %c0_i32 = arith.constant 0 : i32
    %c0_i32_0 = arith.constant 0 : i32
    %c0_i32_1 = arith.constant 0 : i32
    return %c0_i32, %c0_i32_0 : i32, i32
  }
  func.func @transform_2(%arg0: i32) -> (i32, i32, i32) {
    %c0_i32 = arith.constant 0 : i32
    %c0_i32_0 = arith.constant 0 : i32
    %c0_i32_1 = arith.constant 0 : i32
    return %arg0, %c0_i32, %c0_i32_0 : i32, i32, i32
  }
  func.func @transform_3(%arg0: i32) -> (i32, i32, i32) {
    %c0_i32 = arith.constant 0 : i32
    %c0_i32_0 = arith.constant 0 : i32
    %c0_i32_1 = arith.constant 0 : i32
    return %arg0, %c0_i32, %c0_i32_0 : i32, i32, i32
  }
  func.func @transform_4(%arg0: i32) -> (i32, i32, i32) {
    %c0_i32 = arith.constant 0 : i32
    %c0_i32_0 = arith.constant 0 : i32
    %c0_i32_1 = arith.constant 0 : i32
    %c0_i32_2 = arith.constant 0 : i32
    return %c0_i32, %c0_i32_0, %c0_i32_1 : i32, i32, i32
  }
  func.func @transform_5(%arg0: i32) -> (i32, i32) {
    %c0_i32 = arith.constant 0 : i32
    %c0_i32_0 = arith.constant 0 : i32
    %c0_i32_1 = arith.constant 0 : i32
    return %c0_i32, %c0_i32_0 : i32, i32
  }
  func.func @transform_6(%arg0: i32) -> (i32, i32, i32) {
    %c0_i32 = arith.constant 0 : i32
    %c0_i32_0 = arith.constant 0 : i32
    %c0_i32_1 = arith.constant 0 : i32
    %c0_i32_2 = arith.constant 0 : i32
    return %c0_i32, %c0_i32_0, %c0_i32_1 : i32, i32, i32
  }
  func.func @transform_7(%arg0: i32) -> (i32, i32) {
    %c0_i32 = arith.constant 0 : i32
    %c0_i32_0 = arith.constant 0 : i32
    %c0_i32_1 = arith.constant 0 : i32
    return %c0_i32, %c0_i32_0 : i32, i32
  }
  func.func @transform_8(%arg0: i32) -> (i32, i32, i32) {
    %c0_i32 = arith.constant 0 : i32
    %c0_i32_0 = arith.constant 0 : i32
    %c0_i32_1 = arith.constant 0 : i32
    %c0_i32_2 = arith.constant 0 : i32
    return %c0_i32, %c0_i32_0, %c0_i32_1 : i32, i32, i32
  }
  func.func @transform_9(%arg0: i32) -> (i32, i32) {
    %c0_i32 = arith.constant 0 : i32
    %c0_i32_0 = arith.constant 0 : i32
    %c0_i32_1 = arith.constant 0 : i32
    return %c0_i32, %c0_i32_0 : i32, i32
  }
  func.func @transform_10(%arg0: i32) -> (i32, i32, i32) {
    %c0_i32 = arith.constant 0 : i32
    %c0_i32_0 = arith.constant 0 : i32
    %c0_i32_1 = arith.constant 0 : i32
    return %arg0, %c0_i32, %c0_i32_0 : i32, i32, i32
  }
}

</mosaic_0001>

<llo_original>
// kernel: unet_up_coord_forward.1
$region0: #{unet_up_coord_forward.1}
  #allocation0 [shape = 'u32[]', space=smem, size = 0x4, offset = 0x4, fixed_abs, tag = 'smem constant byte address 0x4 - core index']
  #allocation1 [shape = 'u32[144,128]{1,0:T(1,128)}', space=vmem, size = 0x12000, scoped, tag = 'internal scratch']
  %s0 = inlined_call_operand.vmem [shape: f32[4,256], index: 0, kind: input, shape index: {}]
  %s1 = inlined_call_operand.vmem [shape: f32[9,256], index: 1, kind: input, shape index: {}]
  %s2 = inlined_call_operand.vmem [shape: f32[2,8,256], index: 2, kind: input, shape index: {}]
  %s3 = inlined_call_operand.vmem [shape: f32[2,4,256], index: 3, kind: input, shape index: {}]
  %s4 = inlined_call_operand.vmem [shape: f32[4,4,8], index: 4, kind: input, shape index: {}]
  %s5 = inlined_call_operand.vmem [shape: f32[4,1], index: 5, kind: input, shape index: {}]
  %s6 = inlined_call_operand.vmem [shape: f32[9,4,8], index: 6, kind: input, shape index: {}]
  %s7 = inlined_call_operand.vmem [shape: f32[4,1], index: 7, kind: input, shape index: {}]
  %s8 = inlined_call_operand.vmem [shape: f32[9,4,4], index: 8, kind: input, shape index: {}]
  %s9 = inlined_call_operand.vmem [shape: f32[4,1], index: 9, kind: input, shape index: {}]
  %s10 = inlined_call_operand.vmem [shape: f32[2,4,256], index: 10, kind: output, shape index: {}]
  %s11 = sld [smem:[#allocation0]]
  $region73: #{unet_up_coord_forward.1} parent=0
    _
  %s13 = ssub.s32 1, %s11
  %s14 = scalar_select 0, %s13, %s11
  loop: start=0, step=1, limit=4
  $region2: #{unet_up_coord_forward.1} parent=0 // loop_pre_header
    _
  $region3: #{unet_up_coord_forward.1} parent=0 // loop_header
    %s16 = sphi 0, %s20
    %p17 = scmp.ge.s32.totalorder %s16, 4
    %s24 = sphi 0, %s24
    %s26 = sphi 0, %s24
    %s27 = sphi 0, %s26
    %s41 = sphi 0, %s27
    %s45 = sphi 0, %s45
    %s47 = sphi 0, %s45
    %s48 = sphi 0, %s47
    %s62 = sphi 0, %s48
    %s68 = sphi 0, %s70
    %s71 = sphi 0, %s68
    %s72 = sphi 0, %s71
    %s88 = sphi 0, %s72
    %s94 = sphi 0, %s96
    %s97 = sphi 0, %s94
    %s98 = sphi 0, %s97
    %s114 = sphi 0, %s98
    %s118 = sphi 0, %s118
    %s120 = sphi 0, %s118
    %s121 = sphi 0, %s120
    %s135 = sphi 0, %s121
    %s139 = sphi 0, %s139
    %s141 = sphi 0, %s139
    %s142 = sphi 0, %s141
    %s156 = sphi 0, %s142
    %s160 = sphi 0, %s160
    %s162 = sphi 0, %s160
    %s163 = sphi 0, %s162
    %s177 = sphi 0, %s163
    %s181 = sphi 0, %s181
    %s183 = sphi 0, %s181
    %s184 = sphi 0, %s183
    %s198 = sphi 0, %s184
    %s202 = sphi 0, %s202
    %s204 = sphi 0, %s202
    %s205 = sphi 0, %s204
    %s219 = sphi 0, %s205
    %s223 = sphi 0, %s223
    %s225 = sphi 0, %s223
    %s226 = sphi 0, %s225
    %s240 = sphi 0, %s226
    %s246 = sphi 0, %s248
    %s249 = sphi 0, %s246
    %s250 = sphi 0, %s249
    %s266 = sphi 0, %s250
  $region4: #{unet_up_coord_forward.1} parent=0 // loop_header_branch
    %19 = sbr.rel (%p17) target = $region8
  $region5: #{unet_up_coord_forward.1} parent=0 // loop_body
    %s21 = ssub.s32 %s16, 1
    %s22 = ssub.s32 %s16, 2
    %s23 = sadd.s32 %s16, 1
    %s25 = sadd.s32 %s24, 1
    %p28 = scmp.eq.s32.totalorder %s16, 1
    %p29 = scmp.ne.s32.totalorder %s24, %s26
    %p30 = scmp.eq.s32.totalorder %s16, 0
    %p31 = por %p29, %p30
    %p32 = scmp.ne.s32.totalorder %s24, %s26
    %p33 = scmp.eq.s32.totalorder %s21, 1
    %p34 = por %p32, %p33
    %p35 = scmp.ne.s32.totalorder %s26, %s27
    %p36 = scmp.eq.s32.totalorder %s21, 0
    %p37 = por %p35, %p36
    %p38 = scmp.ne.s32.totalorder %s26, %s27
    %p39 = scmp.eq.s32.totalorder %s22, 1
    %p40 = por %p38, %p39
    %p42 = scmp.ne.s32.totalorder %s27, %s41
    %p43 = scmp.eq.s32.totalorder %s22, 0
    %p44 = por %p42, %p43
    %s46 = sadd.s32 %s45, 1
    %p49 = scmp.eq.s32.totalorder %s16, 1
    %p50 = scmp.ne.s32.totalorder %s45, %s47
    %p51 = scmp.eq.s32.totalorder %s16, 0
    %p52 = por %p50, %p51
    %p53 = scmp.ne.s32.totalorder %s45, %s47
    %p54 = scmp.eq.s32.totalorder %s21, 1
    %p55 = por %p53, %p54
    %p56 = scmp.ne.s32.totalorder %s47, %s48
    %p57 = scmp.eq.s32.totalorder %s21, 0
    %p58 = por %p56, %p57
    %p59 = scmp.ne.s32.totalorder %s47, %s48
    %p60 = scmp.eq.s32.totalorder %s22, 1
    %p61 = por %p59, %p60
    %p63 = scmp.ne.s32.totalorder %s48, %s62
    %p64 = scmp.eq.s32.totalorder %s22, 0
    %p65 = por %p63, %p64
    %s66 = ssub.s32 %s16, %s23
    %p67 = scmp.eq.s32.totalorder %s66, 0
    %s69 = sadd.s32 %s68, 1
    %s70 = scalar_select %p67, %s68, %s69
    %p73 = pneg %p67
    %p74 = scmp.eq.s32.totalorder %s16, 1
    %p75 = por %p73, %p74
    %p76 = scmp.ne.s32.totalorder %s68, %s71
    %p77 = scmp.eq.s32.totalorder %s16, 0
    %p78 = por %p76, %p77
    %p79 = scmp.ne.s32.totalorder %s68, %s71
    %p80 = scmp.eq.s32.totalorder %s21, 1
    %p81 = por %p79, %p80
    %p82 = scmp.ne.s32.totalorder %s71, %s72
    %p83 = scmp.eq.s32.totalorder %s21, 0
    %p84 = por %p82, %p83
    %p85 = scmp.ne.s32.totalorder %s71, %s72
    %p86 = scmp.eq.s32.totalorder %s22, 1
    %p87 = por %p85, %p86
    %p89 = scmp.ne.s32.totalorder %s72, %s88
    %p90 = scmp.eq.s32.totalorder %s22, 0
    %p91 = por %p89, %p90
    %s92 = ssub.s32 %s16, %s23
    %p93 = scmp.eq.s32.totalorder %s92, 0
    %s95 = sadd.s32 %s94, 1
    %s96 = scalar_select %p93, %s94, %s95
    %p99 = pneg %p93
    %p100 = scmp.eq.s32.totalorder %s16, 1
    %p101 = por %p99, %p100
    %p102 = scmp.ne.s32.totalorder %s94, %s97
    %p103 = scmp.eq.s32.totalorder %s16, 0
    %p104 = por %p102, %p103
    %p105 = scmp.ne.s32.totalorder %s94, %s97
    %p106 = scmp.eq.s32.totalorder %s21, 1
    %p107 = por %p105, %p106
    %p108 = scmp.ne.s32.totalorder %s97, %s98
    %p109 = scmp.eq.s32.totalorder %s21, 0
    %p110 = por %p108, %p109
    %p111 = scmp.ne.s32.totalorder %s97, %s98
    %p112 = scmp.eq.s32.totalorder %s22, 1
    %p113 = por %p111, %p112
    %p115 = scmp.ne.s32.totalorder %s98, %s114
    %p116 = scmp.eq.s32.totalorder %s22, 0
    %p117 = por %p115, %p116
    %s119 = sadd.s32 %s118, 1
    %p122 = scmp.eq.s32.totalorder %s16, 1
    %p123 = scmp.ne.s32.totalorder %s118, %s120
    %p124 = scmp.eq.s32.totalorder %s16, 0
    %p125 = por %p123, %p124
    %p126 = scmp.ne.s32.totalorder %s118, %s120
    %p127 = scmp.eq.s32.totalorder %s21, 1
    %p128 = por %p126, %p127
    %p129 = scmp.ne.s32.totalorder %s120, %s121
    %p130 = scmp.eq.s32.totalorder %s21, 0
    %p131 = por %p129, %p130
    %p132 = scmp.ne.s32.totalorder %s120, %s121
    %p133 = scmp.eq.s32.totalorder %s22, 1
    %p134 = por %p132, %p133
    %p136 = scmp.ne.s32.totalorder %s121, %s135
    %p137 = scmp.eq.s32.totalorder %s22, 0
    %p138 = por %p136, %p137
    %s140 = sadd.s32 %s139, 1
    %p143 = scmp.eq.s32.totalorder %s16, 1
    %p144 = scmp.ne.s32.totalorder %s139, %s141
    %p145 = scmp.eq.s32.totalorder %s16, 0
    %p146 = por %p144, %p145
    %p147 = scmp.ne.s32.totalorder %s139, %s141
    %p148 = scmp.eq.s32.totalorder %s21, 1
    %p149 = por %p147, %p148
    %p150 = scmp.ne.s32.totalorder %s141, %s142
    %p151 = scmp.eq.s32.totalorder %s21, 0
    %p152 = por %p150, %p151
    %p153 = scmp.ne.s32.totalorder %s141, %s142
    %p154 = scmp.eq.s32.totalorder %s22, 1
    %p155 = por %p153, %p154
    %p157 = scmp.ne.s32.totalorder %s142, %s156
    %p158 = scmp.eq.s32.totalorder %s22, 0
    %p159 = por %p157, %p158
    %s161 = sadd.s32 %s160, 1
    %p164 = scmp.eq.s32.totalorder %s16, 1
    %p165 = scmp.ne.s32.totalorder %s160, %s162
    %p166 = scmp.eq.s32.totalorder %s16, 0
    %p167 = por %p165, %p166
    %p168 = scmp.ne.s32.totalorder %s160, %s162
    %p169 = scmp.eq.s32.totalorder %s21, 1
    %p170 = por %p168, %p169
    %p171 = scmp.ne.s32.totalorder %s162, %s163
    %p172 = scmp.eq.s32.totalorder %s21, 0
    %p173 = por %p171, %p172
    %p174 = scmp.ne.s32.totalorder %s162, %s163
    %p175 = scmp.eq.s32.totalorder %s22, 1
    %p176 = por %p174, %p175
    %p178 = scmp.ne.s32.totalorder %s163, %s177
    %p179 = scmp.eq.s32.totalorder %s22, 0
    %p180 = por %p178, %p179
    %s182 = sadd.s32 %s181, 1
    %p185 = scmp.eq.s32.totalorder %s16, 1
    %p186 = scmp.ne.s32.totalorder %s181, %s183
    %p187 = scmp.eq.s32.totalorder %s16, 0
    %p188 = por %p186, %p187
    %p189 = scmp.ne.s32.totalorder %s181, %s183
    %p190 = scmp.eq.s32.totalorder %s21, 1
    %p191 = por %p189, %p190
    %p192 = scmp.ne.s32.totalorder %s183, %s184
    %p193 = scmp.eq.s32.totalorder %s21, 0
    %p194 = por %p192, %p193
    %p195 = scmp.ne.s32.totalorder %s183, %s184
    %p196 = scmp.eq.s32.totalorder %s22, 1
    %p197 = por %p195, %p196
    %p199 = scmp.ne.s32.totalorder %s184, %s198
    %p200 = scmp.eq.s32.totalorder %s22, 0
    %p201 = por %p199, %p200
    %s203 = sadd.s32 %s202, 1
    %p206 = scmp.eq.s32.totalorder %s16, 1
    %p207 = scmp.ne.s32.totalorder %s202, %s204
    %p208 = scmp.eq.s32.totalorder %s16, 0
    %p209 = por %p207, %p208
    %p210 = scmp.ne.s32.totalorder %s202, %s204
    %p211 = scmp.eq.s32.totalorder %s21, 1
    %p212 = por %p210, %p211
    %p213 = scmp.ne.s32.totalorder %s204, %s205
    %p214 = scmp.eq.s32.totalorder %s21, 0
    %p215 = por %p213, %p214
    %p216 = scmp.ne.s32.totalorder %s204, %s205
    %p217 = scmp.eq.s32.totalorder %s22, 1
    %p218 = por %p216, %p217
    %p220 = scmp.ne.s32.totalorder %s205, %s219
    %p221 = scmp.eq.s32.totalorder %s22, 0
    %p222 = por %p220, %p221
    %s224 = sadd.s32 %s223, 1
    %p227 = scmp.eq.s32.totalorder %s16, 1
    %p228 = scmp.ne.s32.totalorder %s223, %s225
    %p229 = scmp.eq.s32.totalorder %s16, 0
    %p230 = por %p228, %p229
    %p231 = scmp.ne.s32.totalorder %s223, %s225
    %p232 = scmp.eq.s32.totalorder %s21, 1
    %p233 = por %p231, %p232
    %p234 = scmp.ne.s32.totalorder %s225, %s226
    %p235 = scmp.eq.s32.totalorder %s21, 0
    %p236 = por %p234, %p235
    %p237 = scmp.ne.s32.totalorder %s225, %s226
    %p238 = scmp.eq.s32.totalorder %s22, 1
    %p239 = por %p237, %p238
    %p241 = scmp.ne.s32.totalorder %s226, %s240
    %p242 = scmp.eq.s32.totalorder %s22, 0
    %p243 = por %p241, %p242
    %s244 = ssub.s32 %s16, %s23
    %p245 = scmp.eq.s32.totalorder %s244, 0
    %s247 = sadd.s32 %s246, 1
    %s248 = scalar_select %p245, %s246, %s247
    %p251 = pneg %p245
    %p252 = scmp.eq.s32.totalorder %s16, 1
    %p253 = por %p251, %p252
    %p254 = scmp.ne.s32.totalorder %s246, %s249
    %p255 = scmp.eq.s32.totalorder %s16, 0
    %p256 = por %p254, %p255
    %p257 = scmp.ne.s32.totalorder %s246, %s249
    %p258 = scmp.eq.s32.totalorder %s21, 1
    %p259 = por %p257, %p258
    %p260 = scmp.ne.s32.totalorder %s249, %s250
    %p261 = scmp.eq.s32.totalorder %s21, 0
    %p262 = por %p260, %p261
    %p263 = scmp.ne.s32.totalorder %s249, %s250
    %p264 = scmp.eq.s32.totalorder %s22, 1
    %p265 = por %p263, %p264
    %p267 = scmp.ne.s32.totalorder %s250, %s266
    %p268 = scmp.eq.s32.totalorder %s22, 0
    %p269 = por %p267, %p268
    %p270 = scmp.le.s32.totalorder 1, %s16
    %p271 = scmp.lt.s32.totalorder %s16, 3
    %p272 = pnand %p270, %p271
    %p273 = pneg %p272
    // Predicated region
    $region9: #{unet_up_coord_forward.1} parent=5 // pred_check
      _
    $region10: #{unet_up_coord_forward.1} parent=5 // pred_check_branch
      %275 = sbr.rel (%p272) target = $region12
    $region11: #{unet_up_coord_forward.1} parent=5 // pred_region
      %s276 = ssub.s32 %s16, 1
      // Predicated region
      $region13: #{unet_up_coord_forward.1} parent=11 // pred_check
        %p277 = pneg %p37
      $region14: #{unet_up_coord_forward.1} parent=11 // pred_check_branch
        %279 = sbr.rel (%p277) target = $region16
      $region15: #{unet_up_coord_forward.1} parent=11 // pred_region
        _
      $region16: #{unet_up_coord_forward.1} parent=11 // pred_fallthru
        _
      // Predicated region
      $region17: #{unet_up_coord_forward.1} parent=11 // pred_check
        %p280 = pneg %p58
      $region18: #{unet_up_coord_forward.1} parent=11 // pred_check_branch
        %282 = sbr.rel (%p280) target = $region20
      $region19: #{unet_up_coord_forward.1} parent=11 // pred_region
        _
      $region20: #{unet_up_coord_forward.1} parent=11 // pred_fallthru
        _
      // Predicated region
      $region21: #{unet_up_coord_forward.1} parent=11 // pred_check
        %p283 = pneg %p131
      $region22: #{unet_up_coord_forward.1} parent=11 // pred_check_branch
        %285 = sbr.rel (%p283) target = $region24
      $region23: #{unet_up_coord_forward.1} parent=11 // pred_region
        _
      $region24: #{unet_up_coord_forward.1} parent=11 // pred_fallthru
        _
      // Predicated region
      $region25: #{unet_up_coord_forward.1} parent=11 // pred_check
        %p286 = pneg %p152
      $region26: #{unet_up_coord_forward.1} parent=11 // pred_check_branch
        %288 = sbr.rel (%p286) target = $region28
      $region27: #{unet_up_coord_forward.1} parent=11 // pred_region
        _
      $region28: #{unet_up_coord_forward.1} parent=11 // pred_fallthru
        _
      // Predicated region
      $region29: #{unet_up_coord_forward.1} parent=11 // pred_check
        %p289 = pneg %p173
      $region30: #{unet_up_coord_forward.1} parent=11 // pred_check_branch
        %291 = sbr.rel (%p289) target = $region32
      $region31: #{unet_up_coord_forward.1} parent=11 // pred_region
        _
      $region32: #{unet_up_coord_forward.1} parent=11 // pred_fallthru
        _
      // Predicated region
      $region33: #{unet_up_coord_forward.1} parent=11 // pred_check
        %p292 = pneg %p194
      $region34: #{unet_up_coord_forward.1} parent=11 // pred_check_branch
        %294 = sbr.rel (%p292) target = $region36
      $region35: #{unet_up_coord_forward.1} parent=11 // pred_region
        _
      $region36: #{unet_up_coord_forward.1} parent=11 // pred_fallthru
        _
      // Predicated region
      $region37: #{unet_up_coord_forward.1} parent=11 // pred_check
        %p295 = pneg %p215
      $region38: #{unet_up_coord_forward.1} parent=11 // pred_check_branch
        %297 = sbr.rel (%p295) target = $region40
      $region39: #{unet_up_coord_forward.1} parent=11 // pred_region
        _
      $region40: #{unet_up_coord_forward.1} parent=11 // pred_fallthru
        _
      // Predicated region
      $region41: #{unet_up_coord_forward.1} parent=11 // pred_check
        %p298 = pneg %p236
      $region42: #{unet_up_coord_forward.1} parent=11 // pred_check_branch
        %300 = sbr.rel (%p298) target = $region44
      $region43: #{unet_up_coord_forward.1} parent=11 // pred_region
        _
      $region44: #{unet_up_coord_forward.1} parent=11 // pred_fallthru
        _
    $region12: #{unet_up_coord_forward.1} parent=5 // pred_fallthru
      _
    %p301 = scmp.lt.s32.totalorder %s16, 2
    // Predicated region
    $region45: #{unet_up_coord_forward.1} parent=5 // pred_check
      %p302 = pneg %p301
    $region46: #{unet_up_coord_forward.1} parent=5 // pred_check_branch
      %304 = sbr.rel (%p302) target = $region48
    $region47: #{unet_up_coord_forward.1} parent=5 // pred_region
      // Predicated region
      $region49: #{unet_up_coord_forward.1} parent=47 // pred_check
        %p305 = pneg %p78
      $region50: #{unet_up_coord_forward.1} parent=47 // pred_check_branch
        %307 = sbr.rel (%p305) target = $region52
      $region51: #{unet_up_coord_forward.1} parent=47 // pred_region
        %p308 = scmp.lt.s32.totalorder %s16, 1
        %s309 = scalar_select %p308, %s16, 1
        %s310 = smul.addr %s309, 2
        %s311 = smul.addr %s310, 8
        %s312 = scalar_lea.vmem %s2, %s311
      $region52: #{unet_up_coord_forward.1} parent=47 // pred_fallthru
        _
      // Predicated region
      $region53: #{unet_up_coord_forward.1} parent=47 // pred_check
        %p313 = pneg %p104
      $region54: #{unet_up_coord_forward.1} parent=47 // pred_check_branch
        %315 = sbr.rel (%p313) target = $region56
      $region55: #{unet_up_coord_forward.1} parent=47 // pred_region
        %p316 = scmp.lt.s32.totalorder %s16, 1
        %s317 = scalar_select %p316, %s16, 1
        %s318 = smul.addr %s317, 2
        %s319 = smul.addr %s318, 4
        %s320 = scalar_lea.vmem %s3, %s319
      $region56: #{unet_up_coord_forward.1} parent=47 // pred_fallthru
        _
    $region48: #{unet_up_coord_forward.1} parent=5 // pred_fallthru
      _
    %p321 = scmp.le.s32.totalorder 1, %s16
    %p322 = scmp.lt.s32.totalorder %s16, 3
    %p323 = pnand %p321, %p322
    %p324 = pneg %p323
    // Predicated region
    $region57: #{unet_up_coord_forward.1} parent=5 // pred_check
      _
    $region58: #{unet_up_coord_forward.1} parent=5 // pred_check_branch
      %326 = sbr.rel (%p323) target = $region60
    $region59: #{unet_up_coord_forward.1} parent=5 // pred_region
      %s327 = ssub.s32 %s16, 1
      %p328 = pneg %p37
      %p329 = pneg %p34
      %p330 = pneg %p58
      %p331 = pneg %p55
      %p332 = scmp.lt.s32.totalorder %s21, 1
      %s333 = scalar_select %p332, %s21, 1
      %s334 = smul.addr %s333, 2
      %s335 = smul.addr %s334, 8
      %s336 = scalar_lea.vmem %s2, %s335
      %p337 = pneg %p84
      %p338 = pneg %p81
      %p339 = scmp.lt.s32.totalorder %s21, 1
      %s340 = scalar_select %p339, %s21, 1
      %s341 = smul.addr %s340, 2
      %s342 = smul.addr %s341, 4
      %s343 = scalar_lea.vmem %s3, %s342
      %p344 = pneg %p110
      %p345 = pneg %p107
      %p346 = pneg %p131
      %p347 = pneg %p128
      %p348 = pneg %p152
      %p349 = pneg %p149
      %p350 = pneg %p173
      %p351 = pneg %p170
      %p352 = pneg %p194
      %p353 = pneg %p191
      %p354 = pneg %p215
      %p355 = pneg %p212
      %p356 = pneg %p236
      %p357 = pneg %p233
      %p358 = pneg %p262
      %p359 = pneg %p259
      %p360 = scmp.lt.s32.totalorder %s21, 1
      %s361 = scalar_select %p360, %s21, 1
      %s362 = smul.addr %s361, 2
      %s363 = smul.addr %s362, 4
      %s364 = scalar_lea.vmem %s10, %s363
      %p365 = scmp.lt.s32.totalorder %s21, 1
      %s366 = scalar_select %p365, %s21, 1
      %s367 = smul.addr %s366, 2
      %s368 = smul.addr %s367, 8
      %s369 = scalar_lea.vmem %s2, %s368
      %p370 = scmp.lt.s32.totalorder %s21, 1
      %s371 = scalar_select %p370, %s21, 1
      %s372 = smul.addr %s371, 2
      %s373 = smul.addr %s372, 4
      %s374 = scalar_lea.vmem %s3, %s373
      %p375 = scmp.lt.s32.totalorder %s21, 1
      %s376 = scalar_select %p375, %s21, 1
      %s377 = smul.addr %s376, 2
      %s378 = smul.addr %s377, 4
      %s379 = scalar_lea.vmem %s10, %s378
      %v380 = vld [vmem:[%s369] sm:$0xff]
      %v381 = vld [vmem:[%s369 + $0x8] sm:$0xff]
      %v382 = vld [vmem:[%s374] sm:$0xff]
      %v383 = vld [vmem:[%s4] sm:$0xf]
      %v384 = vld [vmem:[%s4 + $0x4] sm:$0xf]
      %v385 = vld [vmem:[%s4 + $0x8] sm:$0xf]
      %v386 = vld [vmem:[%s4 + $0xc] sm:$0xf]
      %v387 = vld [vmem:[%s0] ss:$4 sm:$0x3]
      %v389 = vlaneseq
      %v390 = vshrl.u32 %v389, 7
      %v391 = vsub.s32 0, %v390
      %v392 = vrot.slane %v387, %v391
      %v393 = vlaneseq
      %v394 = vshrl.u32 %v393, 7
      %v395 = vsub.s32 1, %v394
      %v396 = vrot.slane %v387, %v395
      %v399 = vmul.f32 %v380, %v392
      %v400 = vmul.f32 %v381, %v396
      %s401 = scalar_lea.vmem %s0, 1
      %v402 = vld [vmem:[%s401] ss:$4 sm:$0x3]
      %v404 = vlaneseq
      %v405 = vshrl.u32 %v404, 7
      %v406 = vsub.s32 0, %v405
      %v407 = vrot.slane %v402, %v406
      %v408 = vlaneseq
      %v409 = vshrl.u32 %v408, 7
      %v410 = vsub.s32 1, %v409
      %v411 = vrot.slane %v402, %v410
      %v414 = vmul.f32 %v380, %v407
      %v415 = vmul.f32 %v381, %v411
      %vm416 = vcmask 64512
      %v418 = vsel %vm416, %v384, 0
      %420 = vmatprep.subr.mxu0 %v415
      %421 = vmatpush1.msra.mxu0 %v414
      %422 = vmatprep.subr.mxu0 0.0
      %423 = vmatpush1.msra.mxu0 0.0
      %424 = vmatprep.subr.mxu0 0.0
      %425 = vmatpush1.msra.mxu0 0.0
      %426 = vmatprep.subr.mxu0 0.0
      %427 = vmatpush1.msra.mxu0 0.0
      %428 = vmatprep.subr.mxu0 0.0
      %429 = vmatpush1.msra.mxu0 0.0
      %430 = vmatprep.subr.mxu0 0.0
      %431 = vmatpush1.msra.mxu0 0.0
      %432 = vmatprep.subr.mxu0 0.0
      %433 = vmatpush1.msra.mxu0 0.0
      %434 = vmatprep.subr.mxu0 0.0
      %435 = vmatpush1.msra.mxu0 0.0
      %436 = vmatprep.subr.mxu0 0.0
      %437 = vmatpush1.msra.mxu0 0.0
      %438 = vmatprep.subr.mxu0 0.0
      %439 = vmatpush1.msra.mxu0 0.0
      %440 = vmatprep.subr.mxu0 0.0
      %441 = vmatpush1.msra.mxu0 0.0
      %442 = vmatprep.subr.mxu0 0.0
      %443 = vmatpush1.msra.mxu0 0.0
      %444 = vmatprep.subr.mxu0 0.0
      %445 = vmatpush1.msra.mxu0 0.0
      %446 = vmatprep.subr.mxu0 0.0
      %447 = vmatpush1.msra.mxu0 0.0
      %448 = vmatprep.subr.mxu0 0.0
      %449 = vmatpush1.msra.mxu0 0.0
      %450 = vmatprep.subr.mxu0 0.0
      %451 = vmatpush1.msra.mxu0 0.0
      %452 = vmatprep.subr.mxu0 0.0
      %453 = vmatpush1.msra.mxu0 0.0
      %454 = vmatprep.subr.mxu0 0.0
      %455 = vmatpush1.msra.mxu0 0.0
      %456 = vmatprep.subr.mxu0 0.0
      %457 = vmatpush1.msra.mxu0 0.0
      %458 = vmatprep.subr.mxu0 0.0
      %459 = vmatpush1.msra.mxu0 0.0
      %460 = vmatprep.subr.mxu0 0.0
      %461 = vmatpush1.msra.mxu0 0.0
      %462 = vmatprep.subr.mxu0 0.0
      %463 = vmatpush1.msra.mxu0 0.0
      %464 = vmatprep.subr.mxu0 0.0
      %465 = vmatpush1.msra.mxu0 0.0
      %466 = vmatprep.subr.mxu0 0.0
      %467 = vmatpush1.msra.mxu0 0.0
      %468 = vmatprep.subr.mxu0 0.0
      %469 = vmatpush1.msra.mxu0 0.0
      %470 = vmatprep.subr.mxu0 0.0
      %471 = vmatpush1.msra.mxu0 0.0
      %472 = vmatprep.subr.mxu0 0.0
      %473 = vmatpush1.msra.mxu0 0.0
      %474 = vmatprep.subr.mxu0 0.0
      %475 = vmatpush1.msra.mxu0 0.0
      %476 = vmatprep.subr.mxu0 0.0
      %477 = vmatpush1.msra.mxu0 0.0
      %478 = vmatprep.subr.mxu0 0.0
      %479 = vmatpush1.msra.mxu0 0.0
      %480 = vmatprep.subr.mxu0 0.0
      %481 = vmatpush1.msra.mxu0 0.0
      %482 = vmatprep.subr.mxu0 0.0
      %483 = vmatpush1.msra.mxu0 0.0
      %484 = vmatprep.mubr.f32.mxu0 0.0
      %485 = vmatmul.mubr.f32.gmra.mrb[0].mxu0 %v418
      %v486 = vpop.f32.mrb[0].mxu0
      %v487 = vadd.f32 0.0, %v486
      %v488 = vpop.f32.mrb[0].mxu0
      %v489 = vadd.f32 0.0, %v488
      %490 = vdwg.mxu0
      %v492 = vsel %vm416, %v383, 0
      %494 = vmatprep.subr.mxu0 %v400
      %495 = vmatpush1.msra.mxu0 %v399
      %496 = vmatprep.subr.mxu0 0.0
      %497 = vmatpush1.msra.mxu0 0.0
      %498 = vmatprep.subr.mxu0 0.0
      %499 = vmatpush1.msra.mxu0 0.0
      %500 = vmatprep.subr.mxu0 0.0
      %501 = vmatpush1.msra.mxu0 0.0
      %502 = vmatprep.subr.mxu0 0.0
      %503 = vmatpush1.msra.mxu0 0.0
      %504 = vmatprep.subr.mxu0 0.0
      %505 = vmatpush1.msra.mxu0 0.0
      %506 = vmatprep.subr.mxu0 0.0
      %507 = vmatpush1.msra.mxu0 0.0
      %508 = vmatprep.subr.mxu0 0.0
      %509 = vmatpush1.msra.mxu0 0.0
      %510 = vmatprep.subr.mxu0 0.0
      %511 = vmatpush1.msra.mxu0 0.0
      %512 = vmatprep.subr.mxu0 0.0
      %513 = vmatpush1.msra.mxu0 0.0
      %514 = vmatprep.subr.mxu0 0.0
      %515 = vmatpush1.msra.mxu0 0.0
      %516 = vmatprep.subr.mxu0 0.0
      %517 = vmatpush1.msra.mxu0 0.0
      %518 = vmatprep.subr.mxu0 0.0
      %519 = vmatpush1.msra.mxu0 0.0
      %520 = vmatprep.subr.mxu0 0.0
      %521 = vmatpush1.msra.mxu0 0.0
      %522 = vmatprep.subr.mxu0 0.0
      %523 = vmatpush1.msra.mxu0 0.0
      %524 = vmatprep.subr.mxu0 0.0
      %525 = vmatpush1.msra.mxu0 0.0
      %526 = vmatprep.subr.mxu0 0.0
      %527 = vmatpush1.msra.mxu0 0.0
      %528 = vmatprep.subr.mxu0 0.0
      %529 = vmatpush1.msra.mxu0 0.0
      %530 = vmatprep.subr.mxu0 0.0
      %531 = vmatpush1.msra.mxu0 0.0
      %532 = vmatprep.subr.mxu0 0.0
      %533 = vmatpush1.msra.mxu0 0.0
      %534 = vmatprep.subr.mxu0 0.0
      %535 = vmatpush1.msra.mxu0 0.0
      %536 = vmatprep.subr.mxu0 0.0
      %537 = vmatpush1.msra.mxu0 0.0
      %538 = vmatprep.subr.mxu0 0.0
      %539 = vmatpush1.msra.mxu0 0.0
      %540 = vmatprep.subr.mxu0 0.0
      %541 = vmatpush1.msra.mxu0 0.0
      %542 = vmatprep.subr.mxu0 0.0
      %543 = vmatpush1.msra.mxu0 0.0
      %544 = vmatprep.subr.mxu0 0.0
      %545 = vmatpush1.msra.mxu0 0.0
      %546 = vmatprep.subr.mxu0 0.0
      %547 = vmatpush1.msra.mxu0 0.0
      %548 = vmatprep.subr.mxu0 0.0
      %549 = vmatpush1.msra.mxu0 0.0
      %550 = vmatprep.subr.mxu0 0.0
      %551 = vmatpush1.msra.mxu0 0.0
      %552 = vmatprep.subr.mxu0 0.0
      %553 = vmatpush1.msra.mxu0 0.0
      %554 = vmatprep.subr.mxu0 0.0
      %555 = vmatpush1.msra.mxu0 0.0
      %556 = vmatprep.subr.mxu0 0.0
      %557 = vmatpush1.msra.mxu0 0.0
      %558 = vmatprep.mubr.f32.mxu0 0.0
      %559 = vmatmul.mubr.f32.gmra.mrb[0].mxu0 %v492
      %v560 = vpop.f32.mrb[0].mxu0
      %v561 = vadd.f32 %v487, %v560
      %v562 = vpop.f32.mrb[0].mxu0
      %v563 = vadd.f32 %v489, %v562
      %564 = vdwg.mxu0
      %s565 = scalar_lea.vmem %s0, 2
      %v566 = vld [vmem:[%s565] ss:$4 sm:$0x3]
      %v568 = vlaneseq
      %v569 = vshrl.u32 %v568, 7
      %v570 = vsub.s32 0, %v569
      %v571 = vrot.slane %v566, %v570
      %v572 = vlaneseq
      %v573 = vshrl.u32 %v572, 7
      %v574 = vsub.s32 1, %v573
      %v575 = vrot.slane %v566, %v574
      %v578 = vmul.f32 %v380, %v571
      %v579 = vmul.f32 %v381, %v575
      %v581 = vsel %vm416, %v385, 0
      %583 = vmatprep.subr.mxu0 %v579
      %584 = vmatpush1.msra.mxu0 %v578
      %585 = vmatprep.subr.mxu0 0.0
      %586 = vmatpush1.msra.mxu0 0.0
      %587 = vmatprep.subr.mxu0 0.0
      %588 = vmatpush1.msra.mxu0 0.0
      %589 = vmatprep.subr.mxu0 0.0
      %590 = vmatpush1.msra.mxu0 0.0
      %591 = vmatprep.subr.mxu0 0.0
      %592 = vmatpush1.msra.mxu0 0.0
      %593 = vmatprep.subr.mxu0 0.0
      %594 = vmatpush1.msra.mxu0 0.0
      %595 = vmatprep.subr.mxu0 0.0
      %596 = vmatpush1.msra.mxu0 0.0
      %597 = vmatprep.subr.mxu0 0.0
      %598 = vmatpush1.msra.mxu0 0.0
      %599 = vmatprep.subr.mxu0 0.0
      %600 = vmatpush1.msra.mxu0 0.0
      %601 = vmatprep.subr.mxu0 0.0
      %602 = vmatpush1.msra.mxu0 0.0
      %603 = vmatprep.subr.mxu0 0.0
      %604 = vmatpush1.msra.mxu0 0.0
      %605 = vmatprep.subr.mxu0 0.0
      %606 = vmatpush1.msra.mxu0 0.0
      %607 = vmatprep.subr.mxu0 0.0
      %608 = vmatpush1.msra.mxu0 0.0
      %609 = vmatprep.subr.mxu0 0.0
      %610 = vmatpush1.msra.mxu0 0.0
      %611 = vmatprep.subr.mxu0 0.0
      %612 = vmatpush1.msra.mxu0 0.0
      %613 = vmatprep.subr.mxu0 0.0
      %614 = vmatpush1.msra.mxu0 0.0
      %615 = vmatprep.subr.mxu0 0.0
      %616 = vmatpush1.msra.mxu0 0.0
      %617 = vmatprep.subr.mxu0 0.0
      %618 = vmatpush1.msra.mxu0 0.0
      %619 = vmatprep.subr.mxu0 0.0
      %620 = vmatpush1.msra.mxu0 0.0
      %621 = vmatprep.subr.mxu0 0.0
      %622 = vmatpush1.msra.mxu0 0.0
      %623 = vmatprep.subr.mxu0 0.0
      %624 = vmatpush1.msra.mxu0 0.0
      %625 = vmatprep.subr.mxu0 0.0
      %626 = vmatpush1.msra.mxu0 0.0
      %627 = vmatprep.subr.mxu0 0.0
      %628 = vmatpush1.msra.mxu0 0.0
      %629 = vmatprep.subr.mxu0 0.0
      %630 = vmatpush1.msra.mxu0 0.0
      %631 = vmatprep.subr.mxu0 0.0
      %632 = vmatpush1.msra.mxu0 0.0
      %633 = vmatprep.subr.mxu0 0.0
      %634 = vmatpush1.msra.mxu0 0.0
      %635 = vmatprep.subr.mxu0 0.0
      %636 = vmatpush1.msra.mxu0 0.0
      %637 = vmatprep.subr.mxu0 0.0
      %638 = vmatpush1.msra.mxu0 0.0
      %639 = vmatprep.subr.mxu0 0.0
      %640 = vmatpush1.msra.mxu0 0.0
      %641 = vmatprep.subr.mxu0 0.0
      %642 = vmatpush1.msra.mxu0 0.0
      %643 = vmatprep.subr.mxu0 0.0
      %644 = vmatpush1.msra.mxu0 0.0
      %645 = vmatprep.subr.mxu0 0.0
      %646 = vmatpush1.msra.mxu0 0.0
      %647 = vmatprep.mubr.f32.mxu0 0.0
      %648 = vmatmul.mubr.f32.gmra.mrb[0].mxu0 %v581
      %v649 = vpop.f32.mrb[0].mxu0
      %v650 = vadd.f32 0.0, %v649
      %v651 = vpop.f32.mrb[0].mxu0
      %v652 = vadd.f32 0.0, %v651
      %653 = vdwg.mxu0
      %v654 = vadd.f32 %v561, %v650
      %v655 = vadd.f32 %v563, %v652
      %s656 = scalar_lea.vmem %s0, 3
      %v657 = vld [vmem:[%s656] ss:$4 sm:$0x3]
      %v659 = vlaneseq
      %v660 = vshrl.u32 %v659, 7
      %v661 = vsub.s32 0, %v660
      %v662 = vrot.slane %v657, %v661
      %v663 = vlaneseq
      %v664 = vshrl.u32 %v663, 7
      %v665 = vsub.s32 1, %v664
      %v666 = vrot.slane %v657, %v665
      %v669 = vmul.f32 %v380, %v662
      %v670 = vmul.f32 %v381, %v666
      %v672 = vsel %vm416, %v386, 0
      %674 = vmatprep.subr.mxu0 %v670
      %675 = vmatpush1.msra.mxu0 %v669
      %676 = vmatprep.subr.mxu0 0.0
      %677 = vmatpush1.msra.mxu0 0.0
      %678 = vmatprep.subr.mxu0 0.0
      %679 = vmatpush1.msra.mxu0 0.0
      %680 = vmatprep.subr.mxu0 0.0
      %681 = vmatpush1.msra.mxu0 0.0
      %682 = vmatprep.subr.mxu0 0.0
      %683 = vmatpush1.msra.mxu0 0.0
      %684 = vmatprep.subr.mxu0 0.0
      %685 = vmatpush1.msra.mxu0 0.0
      %686 = vmatprep.subr.mxu0 0.0
      %687 = vmatpush1.msra.mxu0 0.0
      %688 = vmatprep.subr.mxu0 0.0
      %689 = vmatpush1.msra.mxu0 0.0
      %690 = vmatprep.subr.mxu0 0.0
      %691 = vmatpush1.msra.mxu0 0.0
      %692 = vmatprep.subr.mxu0 0.0
      %693 = vmatpush1.msra.mxu0 0.0
      %694 = vmatprep.subr.mxu0 0.0
      %695 = vmatpush1.msra.mxu0 0.0
      %696 = vmatprep.subr.mxu0 0.0
      %697 = vmatpush1.msra.mxu0 0.0
      %698 = vmatprep.subr.mxu0 0.0
      %699 = vmatpush1.msra.mxu0 0.0
      %700 = vmatprep.subr.mxu0 0.0
      %701 = vmatpush1.msra.mxu0 0.0
      %702 = vmatprep.subr.mxu0 0.0
      %703 = vmatpush1.msra.mxu0 0.0
      %704 = vmatprep.subr.mxu0 0.0
      %705 = vmatpush1.msra.mxu0 0.0
      %706 = vmatprep.subr.mxu0 0.0
      %707 = vmatpush1.msra.mxu0 0.0
      %708 = vmatprep.subr.mxu0 0.0
      %709 = vmatpush1.msra.mxu0 0.0
      %710 = vmatprep.subr.mxu0 0.0
      %711 = vmatpush1.msra.mxu0 0.0
      %712 = vmatprep.subr.mxu0 0.0
      %713 = vmatpush1.msra.mxu0 0.0
      %714 = vmatprep.subr.mxu0 0.0
      %715 = vmatpush1.msra.mxu0 0.0
      %716 = vmatprep.subr.mxu0 0.0
      %717 = vmatpush1.msra.mxu0 0.0
      %718 = vmatprep.subr.mxu0 0.0
      %719 = vmatpush1.msra.mxu0 0.0
      %720 = vmatprep.subr.mxu0 0.0
      %721 = vmatpush1.msra.mxu0 0.0
      %722 = vmatprep.subr.mxu0 0.0
      %723 = vmatpush1.msra.mxu0 0.0
      %724 = vmatprep.subr.mxu0 0.0
      %725 = vmatpush1.msra.mxu0 0.0
      %726 = vmatprep.subr.mxu0 0.0
      %727 = vmatpush1.msra.mxu0 0.0
      %728 = vmatprep.subr.mxu0 0.0
      %729 = vmatpush1.msra.mxu0 0.0
      %730 = vmatprep.subr.mxu0 0.0
      %731 = vmatpush1.msra.mxu0 0.0
      %732 = vmatprep.subr.mxu0 0.0
      %733 = vmatpush1.msra.mxu0 0.0
      %734 = vmatprep.subr.mxu0 0.0
      %735 = vmatpush1.msra.mxu0 0.0
      %736 = vmatprep.subr.mxu0 0.0
      %737 = vmatpush1.msra.mxu0 0.0
      %738 = vmatprep.mubr.f32.mxu0 0.0
      %739 = vmatmul.mubr.f32.gmra.mrb[0].mxu0 %v672
      %v740 = vpop.f32.mrb[0].mxu0
      %v741 = vadd.f32 0.0, %v740
      %v742 = vpop.f32.mrb[0].mxu0
      %v743 = vadd.f32 0.0, %v742
      %744 = vdwg.mxu0
      %v745 = vadd.f32 %v654, %v741
      %v746 = vadd.f32 %v655, %v743
      %v747 = vld [vmem:[%s5] sm:$0xf]
      %749 = vset.pattern.permute.xlu0 0
      %750 = vperm.xlu0 %749, %v747
      %v751 = vpop.permute.xlu0 %750
      %v753 = vadd.f32 %v745, %v751
      %v754 = vadd.f32 %v746, %v751
      %v756 = vcombine.low %v382, %v382
      %vm758 = vcmask 1043456
      %v759 = vsel %vm758, %v753, %v756
      %v760 = vsel %vm758, %v754, %v382
      %v761 = vld [vmem:[%s6] sm:$0xf]
      %v762 = vld [vmem:[%s6 + $0x4] sm:$0xf]
      %v763 = vld [vmem:[%s6 + $0x8] sm:$0xf]
      %v764 = vld [vmem:[%s6 + $0xc] sm:$0xf]
      %v765 = vld [vmem:[%s6 + $0x10] sm:$0xf]
      %v766 = vld [vmem:[%s6 + $0x14] sm:$0xf]
      %v767 = vld [vmem:[%s6 + $0x18] sm:$0xf]
      %v768 = vld [vmem:[%s6 + $0x1c] sm:$0xf]
      %v769 = vld [vmem:[%s6 + $0x20] sm:$0xf]
      %v770 = vld [vmem:[%s7] sm:$0xf]
      %772 = vrot.lane.b32.xlu0 %v760, 17
      %v773 = vpop.permute.xlu0 %772
      %776 = vrot.lane.b32.xlu0 %v759, 17
      %v777 = vpop.permute.xlu0 %776
      %vm778 = vcmask 138240
      %v779 = vsel %vm778, %v777, %v773
      %v782 = vsel %vm778, %v773, %v777
      %v783 = vld [vmem:[%s1] ss:$8 sm:$0x3]
      %v785 = vlaneseq
      %v786 = vshrl.u32 %v785, 7
      %v787 = vsub.s32 0, %v786
      %v788 = vrot.slane %v783, %v787
      %v789 = vlaneseq
      %v790 = vshrl.u32 %v789, 7
      %v791 = vsub.s32 1, %v790
      %v792 = vrot.slane %v783, %v791
      %v795 = vmul.f32 %v782, %v788
      %v796 = vmul.f32 %v779, %v792
      %797 = vrot.lane.b32.xlu0 %v760, 16
      %v798 = vpop.permute.xlu0 %797
      %800 = vrot.lane.b32.xlu0 %v759, 16
      %v801 = vpop.permute.xlu0 %800
      %vm802 = vcmask 130048
      %v803 = vsel %vm802, %v801, %v798
      %v806 = vsel %vm802, %v798, %v801
      %s807 = scalar_lea.vmem %s1, 1
      %v808 = vld [vmem:[%s807] ss:$8 sm:$0x3]
      %v810 = vlaneseq
      %v811 = vshrl.u32 %v810, 7
      %v812 = vsub.s32 0, %v811
      %v813 = vrot.slane %v808, %v812
      %v814 = vlaneseq
      %v815 = vshrl.u32 %v814, 7
      %v816 = vsub.s32 1, %v815
      %v817 = vrot.slane %v808, %v816
      %v820 = vmul.f32 %v806, %v813
      %v821 = vmul.f32 %v803, %v817
      %v823 = vsel %vm416, %v762, 0
      %825 = vmatprep.subr.mxu0 %v821
      %826 = vmatpush1.msra.mxu0 %v820
      %827 = vmatprep.subr.mxu0 0.0
      %828 = vmatpush1.msra.mxu0 0.0
      %829 = vmatprep.subr.mxu0 0.0
      %830 = vmatpush1.msra.mxu0 0.0
      %831 = vmatprep.subr.mxu0 0.0
      %832 = vmatpush1.msra.mxu0 0.0
      %833 = vmatprep.subr.mxu0 0.0
      %834 = vmatpush1.msra.mxu0 0.0
      %835 = vmatprep.subr.mxu0 0.0
      %836 = vmatpush1.msra.mxu0 0.0
      %837 = vmatprep.subr.mxu0 0.0
      %838 = vmatpush1.msra.mxu0 0.0
      %839 = vmatprep.subr.mxu0 0.0
      %840 = vmatpush1.msra.mxu0 0.0
      %841 = vmatprep.subr.mxu0 0.0
      %842 = vmatpush1.msra.mxu0 0.0
      %843 = vmatprep.subr.mxu0 0.0
      %844 = vmatpush1.msra.mxu0 0.0
      %845 = vmatprep.subr.mxu0 0.0
      %846 = vmatpush1.msra.mxu0 0.0
      %847 = vmatprep.subr.mxu0 0.0
      %848 = vmatpush1.msra.mxu0 0.0
      %849 = vmatprep.subr.mxu0 0.0
      %850 = vmatpush1.msra.mxu0 0.0
      %851 = vmatprep.subr.mxu0 0.0
      %852 = vmatpush1.msra.mxu0 0.0
      %853 = vmatprep.subr.mxu0 0.0
      %854 = vmatpush1.msra.mxu0 0.0
      %855 = vmatprep.subr.mxu0 0.0
      %856 = vmatpush1.msra.mxu0 0.0
      %857 = vmatprep.subr.mxu0 0.0
      %858 = vmatpush1.msra.mxu0 0.0
      %859 = vmatprep.subr.mxu0 0.0
      %860 = vmatpush1.msra.mxu0 0.0
      %861 = vmatprep.subr.mxu0 0.0
      %862 = vmatpush1.msra.mxu0 0.0
      %863 = vmatprep.subr.mxu0 0.0
      %864 = vmatpush1.msra.mxu0 0.0
      %865 = vmatprep.subr.mxu0 0.0
      %866 = vmatpush1.msra.mxu0 0.0
      %867 = vmatprep.subr.mxu0 0.0
      %868 = vmatpush1.msra.mxu0 0.0
      %869 = vmatprep.subr.mxu0 0.0
      %870 = vmatpush1.msra.mxu0 0.0
      %871 = vmatprep.subr.mxu0 0.0
      %872 = vmatpush1.msra.mxu0 0.0
      %873 = vmatprep.subr.mxu0 0.0
      %874 = vmatpush1.msra.mxu0 0.0
      %875 = vmatprep.subr.mxu0 0.0
      %876 = vmatpush1.msra.mxu0 0.0
      %877 = vmatprep.subr.mxu0 0.0
      %878 = vmatpush1.msra.mxu0 0.0
      %879 = vmatprep.subr.mxu0 0.0
      %880 = vmatpush1.msra.mxu0 0.0
      %881 = vmatprep.subr.mxu0 0.0
      %882 = vmatpush1.msra.mxu0 0.0
      %883 = vmatprep.subr.mxu0 0.0
      %884 = vmatpush1.msra.mxu0 0.0
      %885 = vmatprep.subr.mxu0 0.0
      %886 = vmatpush1.msra.mxu0 0.0
      %887 = vmatprep.subr.mxu0 0.0
      %888 = vmatpush1.msra.mxu0 0.0
      %889 = vmatprep.mubr.f32.mxu0 0.0
      %890 = vmatmul.mubr.f32.gmra.mrb[0].mxu0 %v823
      %v891 = vpop.f32.mrb[0].mxu0
      %v892 = vadd.f32 0.0, %v891
      %v893 = vpop.f32.mrb[0].mxu0
      %v894 = vadd.f32 0.0, %v893
      %895 = vdwg.mxu0
      %v897 = vsel %vm416, %v761, 0
      %899 = vmatprep.subr.mxu0 %v796
      %900 = vmatpush1.msra.mxu0 %v795
      %901 = vmatprep.subr.mxu0 0.0
      %902 = vmatpush1.msra.mxu0 0.0
      %903 = vmatprep.subr.mxu0 0.0
      %904 = vmatpush1.msra.mxu0 0.0
      %905 = vmatprep.subr.mxu0 0.0
      %906 = vmatpush1.msra.mxu0 0.0
      %907 = vmatprep.subr.mxu0 0.0
      %908 = vmatpush1.msra.mxu0 0.0
      %909 = vmatprep.subr.mxu0 0.0
      %910 = vmatpush1.msra.mxu0 0.0
      %911 = vmatprep.subr.mxu0 0.0
      %912 = vmatpush1.msra.mxu0 0.0
      %913 = vmatprep.subr.mxu0 0.0
      %914 = vmatpush1.msra.mxu0 0.0
      %915 = vmatprep.subr.mxu0 0.0
      %916 = vmatpush1.msra.mxu0 0.0
      %917 = vmatprep.subr.mxu0 0.0
      %918 = vmatpush1.msra.mxu0 0.0
      %919 = vmatprep.subr.mxu0 0.0
      %920 = vmatpush1.msra.mxu0 0.0
      %921 = vmatprep.subr.mxu0 0.0
      %922 = vmatpush1.msra.mxu0 0.0
      %923 = vmatprep.subr.mxu0 0.0
      %924 = vmatpush1.msra.mxu0 0.0
      %925 = vmatprep.subr.mxu0 0.0
      %926 = vmatpush1.msra.mxu0 0.0
      %927 = vmatprep.subr.mxu0 0.0
      %928 = vmatpush1.msra.mxu0 0.0
      %929 = vmatprep.subr.mxu0 0.0
      %930 = vmatpush1.msra.mxu0 0.0
      %931 = vmatprep.subr.mxu0 0.0
      %932 = vmatpush1.msra.mxu0 0.0
      %933 = vmatprep.subr.mxu0 0.0
      %934 = vmatpush1.msra.mxu0 0.0
      %935 = vmatprep.subr.mxu0 0.0
      %936 = vmatpush1.msra.mxu0 0.0
      %937 = vmatprep.subr.mxu0 0.0
      %938 = vmatpush1.msra.mxu0 0.0
      %939 = vmatprep.subr.mxu0 0.0
      %940 = vmatpush1.msra.mxu0 0.0
      %941 = vmatprep.subr.mxu0 0.0
      %942 = vmatpush1.msra.mxu0 0.0
      %943 = vmatprep.subr.mxu0 0.0
      %944 = vmatpush1.msra.mxu0 0.0
      %945 = vmatprep.subr.mxu0 0.0
      %946 = vmatpush1.msra.mxu0 0.0
      %947 = vmatprep.subr.mxu0 0.0
      %948 = vmatpush1.msra.mxu0 0.0
      %949 = vmatprep.subr.mxu0 0.0
      %950 = vmatpush1.msra.mxu0 0.0
      %951 = vmatprep.subr.mxu0 0.0
      %952 = vmatpush1.msra.mxu0 0.0
      %953 = vmatprep.subr.mxu0 0.0
      %954 = vmatpush1.msra.mxu0 0.0
      %955 = vmatprep.subr.mxu0 0.0
      %956 = vmatpush1.msra.mxu0 0.0
      %957 = vmatprep.subr.mxu0 0.0
      %958 = vmatpush1.msra.mxu0 0.0
      %959 = vmatprep.subr.mxu0 0.0
      %960 = vmatpush1.msra.mxu0 0.0
      %961 = vmatprep.subr.mxu0 0.0
      %962 = vmatpush1.msra.mxu0 0.0
      %963 = vmatprep.mubr.f32.mxu0 0.0
      %964 = vmatmul.mubr.f32.gmra.mrb[0].mxu0 %v897
      %v965 = vpop.f32.mrb[0].mxu0
      %v966 = vadd.f32 %v892, %v965
      %v967 = vpop.f32.mrb[0].mxu0
      %v968 = vadd.f32 %v894, %v967
      %969 = vdwg.mxu0
      %970 = vrot.lane.b32.xlu0 %v760, 15
      %v971 = vpop.permute.xlu0 %970
      %973 = vrot.lane.b32.xlu0 %v759, 15
      %v974 = vpop.permute.xlu0 %973
      %vm975 = vcmask 121856
      %v976 = vsel %vm975, %v974, %v971
      %v979 = vsel %vm975, %v971, %v974
      %s980 = scalar_lea.vmem %s1, 2
      %v981 = vld [vmem:[%s980] ss:$8 sm:$0x3]
      %v983 = vlaneseq
      %v984 = vshrl.u32 %v983, 7
      %v985 = vsub.s32 0, %v984
      %v986 = vrot.slane %v981, %v985
      %v987 = vlaneseq
      %v988 = vshrl.u32 %v987, 7
      %v989 = vsub.s32 1, %v988
      %v990 = vrot.slane %v981, %v989
      %v993 = vmul.f32 %v979, %v986
      %v994 = vmul.f32 %v976, %v990
      %v996 = vsel %vm416, %v763, 0
      %998 = vmatprep.subr.mxu0 %v994
      %999 = vmatpush1.msra.mxu0 %v993
      %1000 = vmatprep.subr.mxu0 0.0
      %1001 = vmatpush1.msra.mxu0 0.0
      %1002 = vmatprep.subr.mxu0 0.0
      %1003 = vmatpush1.msra.mxu0 0.0
      %1004 = vmatprep.subr.mxu0 0.0
      %1005 = vmatpush1.msra.mxu0 0.0
      %1006 = vmatprep.subr.mxu0 0.0
      %1007 = vmatpush1.msra.mxu0 0.0
      %1008 = vmatprep.subr.mxu0 0.0
      %1009 = vmatpush1.msra.mxu0 0.0
      %1010 = vmatprep.subr.mxu0 0.0
      %1011 = vmatpush1.msra.mxu0 0.0
      %1012 = vmatprep.subr.mxu0 0.0
      %1013 = vmatpush1.msra.mxu0 0.0
      %1014 = vmatprep.subr.mxu0 0.0
      %1015 = vmatpush1.msra.mxu0 0.0
      %1016 = vmatprep.subr.mxu0 0.0
      %1017 = vmatpush1.msra.mxu0 0.0
      %1018 = vmatprep.subr.mxu0 0.0
      %1019 = vmatpush1.msra.mxu0 0.0
      %1020 = vmatprep.subr.mxu0 0.0
      %1021 = vmatpush1.msra.mxu0 0.0
      %1022 = vmatprep.subr.mxu0 0.0
      %1023 = vmatpush1.msra.mxu0 0.0
      %1024 = vmatprep.subr.mxu0 0.0
      %1025 = vmatpush1.msra.mxu0 0.0
      %1026 = vmatprep.subr.mxu0 0.0
      %1027 = vmatpush1.msra.mxu0 0.0
      %1028 = vmatprep.subr.mxu0 0.0
      %1029 = vmatpush1.msra.mxu0 0.0
      %1030 = vmatprep.subr.mxu0 0.0
      %1031 = vmatpush1.msra.mxu0 0.0
      %1032 = vmatprep.subr.mxu0 0.0
      %1033 = vmatpush1.msra.mxu0 0.0
      %1034 = vmatprep.subr.mxu0 0.0
      %1035 = vmatpush1.msra.mxu0 0.0
      %1036 = vmatprep.subr.mxu0 0.0
      %1037 = vmatpush1.msra.mxu0 0.0
      %1038 = vmatprep.subr.mxu0 0.0
      %1039 = vmatpush1.msra.mxu0 0.0
      %1040 = vmatprep.subr.mxu0 0.0
      %1041 = vmatpush1.msra.mxu0 0.0
      %1042 = vmatprep.subr.mxu0 0.0
      %1043 = vmatpush1.msra.mxu0 0.0
      %1044 = vmatprep.subr.mxu0 0.0
      %1045 = vmatpush1.msra.mxu0 0.0
      %1046 = vmatprep.subr.mxu0 0.0
      %1047 = vmatpush1.msra.mxu0 0.0
      %1048 = vmatprep.subr.mxu0 0.0
      %1049 = vmatpush1.msra.mxu0 0.0
      %1050 = vmatprep.subr.mxu0 0.0
      %1051 = vmatpush1.msra.mxu0 0.0
      %1052 = vmatprep.subr.mxu0 0.0
      %1053 = vmatpush1.msra.mxu0 0.0
      %1054 = vmatprep.subr.mxu0 0.0
      %1055 = vmatpush1.msra.mxu0 0.0
      %1056 = vmatprep.subr.mxu0 0.0
      %1057 = vmatpush1.msra.mxu0 0.0
      %1058 = vmatprep.subr.mxu0 0.0
      %1059 = vmatpush1.msra.mxu0 0.0
      %1060 = vmatprep.subr.mxu0 0.0
      %1061 = vmatpush1.msra.mxu0 0.0
      %1062 = vmatprep.mubr.f32.mxu0 0.0
      %1063 = vmatmul.mubr.f32.gmra.mrb[0].mxu0 %v996
      %v1064 = vpop.f32.mrb[0].mxu0
      %v1065 = vadd.f32 0.0, %v1064
      %v1066 = vpop.f32.mrb[0].mxu0
      %v1067 = vadd.f32 0.0, %v1066
      %1068 = vdwg.mxu0
      %v1069 = vadd.f32 %v966, %v1065
      %v1070 = vadd.f32 %v968, %v1067
      %1071 = vrot.lane.b32.xlu0 %v760, 1
      %v1072 = vpop.permute.xlu0 %1071
      %1074 = vrot.lane.b32.xlu0 %v759, 1
      %v1075 = vpop.permute.xlu0 %1074
      %vm1076 = vcmask 7168
      %v1077 = vsel %vm1076, %v1075, %v1072
      %v1080 = vsel %vm1076, %v1072, %v1075
      %s1081 = scalar_lea.vmem %s1, 3
      %v1082 = vld [vmem:[%s1081] ss:$8 sm:$0x3]
      %v1084 = vlaneseq
      %v1085 = vshrl.u32 %v1084, 7
      %v1086 = vsub.s32 0, %v1085
      %v1087 = vrot.slane %v1082, %v1086
      %v1088 = vlaneseq
      %v1089 = vshrl.u32 %v1088, 7
      %v1090 = vsub.s32 1, %v1089
      %v1091 = vrot.slane %v1082, %v1090
      %v1094 = vmul.f32 %v1080, %v1087
      %v1095 = vmul.f32 %v1077, %v1091
      %v1097 = vsel %vm416, %v764, 0
      %1099 = vmatprep.subr.mxu0 %v1095
      %1100 = vmatpush1.msra.mxu0 %v1094
      %1101 = vmatprep.subr.mxu0 0.0
      %1102 = vmatpush1.msra.mxu0 0.0
      %1103 = vmatprep.subr.mxu0 0.0
      %1104 = vmatpush1.msra.mxu0 0.0
      %1105 = vmatprep.subr.mxu0 0.0
      %1106 = vmatpush1.msra.mxu0 0.0
      %1107 = vmatprep.subr.mxu0 0.0
      %1108 = vmatpush1.msra.mxu0 0.0
      %1109 = vmatprep.subr.mxu0 0.0
      %1110 = vmatpush1.msra.mxu0 0.0
      %1111 = vmatprep.subr.mxu0 0.0
      %1112 = vmatpush1.msra.mxu0 0.0
      %1113 = vmatprep.subr.mxu0 0.0
      %1114 = vmatpush1.msra.mxu0 0.0
      %1115 = vmatprep.subr.mxu0 0.0
      %1116 = vmatpush1.msra.mxu0 0.0
      %1117 = vmatprep.subr.mxu0 0.0
      %1118 = vmatpush1.msra.mxu0 0.0
      %1119 = vmatprep.subr.mxu0 0.0
      %1120 = vmatpush1.msra.mxu0 0.0
      %1121 = vmatprep.subr.mxu0 0.0
      %1122 = vmatpush1.msra.mxu0 0.0
      %1123 = vmatprep.subr.mxu0 0.0
      %1124 = vmatpush1.msra.mxu0 0.0
      %1125 = vmatprep.subr.mxu0 0.0
      %1126 = vmatpush1.msra.mxu0 0.0
      %1127 = vmatprep.subr.mxu0 0.0
      %1128 = vmatpush1.msra.mxu0 0.0
      %1129 = vmatprep.subr.mxu0 0.0
      %1130 = vmatpush1.msra.mxu0 0.0
      %1131 = vmatprep.subr.mxu0 0.0
      %1132 = vmatpush1.msra.mxu0 0.0
      %1133 = vmatprep.subr.mxu0 0.0
      %1134 = vmatpush1.msra.mxu0 0.0
      %1135 = vmatprep.subr.mxu0 0.0
      %1136 = vmatpush1.msra.mxu0 0.0
      %1137 = vmatprep.subr.mxu0 0.0
      %1138 = vmatpush1.msra.mxu0 0.0
      %1139 = vmatprep.subr.mxu0 0.0
      %1140 = vmatpush1.msra.mxu0 0.0
      %1141 = vmatprep.subr.mxu0 0.0
      %1142 = vmatpush1.msra.mxu0 0.0
      %1143 = vmatprep.subr.mxu0 0.0
      %1144 = vmatpush1.msra.mxu0 0.0
      %1145 = vmatprep.subr.mxu0 0.0
      %1146 = vmatpush1.msra.mxu0 0.0
      %1147 = vmatprep.subr.mxu0 0.0
      %1148 = vmatpush1.msra.mxu0 0.0
      %1149 = vmatprep.subr.mxu0 0.0
      %1150 = vmatpush1.msra.mxu0 0.0
      %1151 = vmatprep.subr.mxu0 0.0
      %1152 = vmatpush1.msra.mxu0 0.0
      %1153 = vmatprep.subr.mxu0 0.0
      %1154 = vmatpush1.msra.mxu0 0.0
      %1155 = vmatprep.subr.mxu0 0.0
      %1156 = vmatpush1.msra.mxu0 0.0
      %1157 = vmatprep.subr.mxu0 0.0
      %1158 = vmatpush1.msra.mxu0 0.0
      %1159 = vmatprep.subr.mxu0 0.0
      %1160 = vmatpush1.msra.mxu0 0.0
      %1161 = vmatprep.subr.mxu0 0.0
      %1162 = vmatpush1.msra.mxu0 0.0
      %1163 = vmatprep.mubr.f32.mxu0 0.0
      %1164 = vmatmul.mubr.f32.gmra.mrb[0].mxu0 %v1097
      %v1165 = vpop.f32.mrb[0].mxu0
      %v1166 = vadd.f32 0.0, %v1165
      %v1167 = vpop.f32.mrb[0].mxu0
      %v1168 = vadd.f32 0.0, %v1167
      %1169 = vdwg.mxu0
      %v1170 = vadd.f32 %v1069, %v1166
      %v1171 = vadd.f32 %v1070, %v1168
      %v1173 = vsel %vm416, %v765, 0
      %1175 = vmatprep.subr.mxu0 %v760
      %1176 = vmatpush1.msra.mxu0 %v759
      %1177 = vmatprep.subr.mxu0 0.0
      %1178 = vmatpush1.msra.mxu0 0.0
      %1179 = vmatprep.subr.mxu0 0.0
      %1180 = vmatpush1.msra.mxu0 0.0
      %1181 = vmatprep.subr.mxu0 0.0
      %1182 = vmatpush1.msra.mxu0 0.0
      %1183 = vmatprep.subr.mxu0 0.0
      %1184 = vmatpush1.msra.mxu0 0.0
      %1185 = vmatprep.subr.mxu0 0.0
      %1186 = vmatpush1.msra.mxu0 0.0
      %1187 = vmatprep.subr.mxu0 0.0
      %1188 = vmatpush1.msra.mxu0 0.0
      %1189 = vmatprep.subr.mxu0 0.0
      %1190 = vmatpush1.msra.mxu0 0.0
      %1191 = vmatprep.subr.mxu0 0.0
      %1192 = vmatpush1.msra.mxu0 0.0
      %1193 = vmatprep.subr.mxu0 0.0
      %1194 = vmatpush1.msra.mxu0 0.0
      %1195 = vmatprep.subr.mxu0 0.0
      %1196 = vmatpush1.msra.mxu0 0.0
      %1197 = vmatprep.subr.mxu0 0.0
      %1198 = vmatpush1.msra.mxu0 0.0
      %1199 = vmatprep.subr.mxu0 0.0
      %1200 = vmatpush1.msra.mxu0 0.0
      %1201 = vmatprep.subr.mxu0 0.0
      %1202 = vmatpush1.msra.mxu0 0.0
      %1203 = vmatprep.subr.mxu0 0.0
      %1204 = vmatpush1.msra.mxu0 0.0
      %1205 = vmatprep.subr.mxu0 0.0
      %1206 = vmatpush1.msra.mxu0 0.0
      %1207 = vmatprep.subr.mxu0 0.0
      %1208 = vmatpush1.msra.mxu0 0.0
      %1209 = vmatprep.subr.mxu0 0.0
      %1210 = vmatpush1.msra.mxu0 0.0
      %1211 = vmatprep.subr.mxu0 0.0
      %1212 = vmatpush1.msra.mxu0 0.0
      %1213 = vmatprep.subr.mxu0 0.0
      %1214 = vmatpush1.msra.mxu0 0.0
      %1215 = vmatprep.subr.mxu0 0.0
      %1216 = vmatpush1.msra.mxu0 0.0
      %1217 = vmatprep.subr.mxu0 0.0
      %1218 = vmatpush1.msra.mxu0 0.0
      %1219 = vmatprep.subr.mxu0 0.0
      %1220 = vmatpush1.msra.mxu0 0.0
      %1221 = vmatprep.subr.mxu0 0.0
      %1222 = vmatpush1.msra.mxu0 0.0
      %1223 = vmatprep.subr.mxu0 0.0
      %1224 = vmatpush1.msra.mxu0 0.0
      %1225 = vmatprep.subr.mxu0 0.0
      %1226 = vmatpush1.msra.mxu0 0.0
      %1227 = vmatprep.subr.mxu0 0.0
      %1228 = vmatpush1.msra.mxu0 0.0
      %1229 = vmatprep.subr.mxu0 0.0
      %1230 = vmatpush1.msra.mxu0 0.0
      %1231 = vmatprep.subr.mxu0 0.0
      %1232 = vmatpush1.msra.mxu0 0.0
      %1233 = vmatprep.subr.mxu0 0.0
      %1234 = vmatpush1.msra.mxu0 0.0
      %1235 = vmatprep.subr.mxu0 0.0
      %1236 = vmatpush1.msra.mxu0 0.0
      %1237 = vmatprep.subr.mxu0 0.0
      %1238 = vmatpush1.msra.mxu0 0.0
      %1239 = vmatprep.mubr.f32.mxu0 0.0
      %1240 = vmatmul.mubr.f32.gmra.mrb[0].mxu0 %v1173
      %v1241 = vpop.f32.mrb[0].mxu0
      %v1242 = vadd.f32 0.0, %v1241
      %v1243 = vpop.f32.mrb[0].mxu0
      %v1244 = vadd.f32 0.0, %v1243
      %1245 = vdwg.mxu0
      %v1246 = vadd.f32 %v1170, %v1242
      %v1247 = vadd.f32 %v1171, %v1244
      %1248 = vrot.lane.b32.xlu0 %v759, 127
      %v1249 = vpop.permute.xlu0 %1248
      %1250 = vrot.lane.b32.xlu0 %v760, 127
      %v1251 = vpop.permute.xlu0 %1250
      %vm1252 = vcmask 1039360
      %v1253 = vsel %vm1252, %v1249, %v1251
      %v1257 = vsel %vm1252, %v1251, %v1249
      %s1258 = scalar_lea.vmem %s1, 5
      %v1259 = vld [vmem:[%s1258] ss:$8 sm:$0x3]
      %v1261 = vlaneseq
      %v1262 = vshrl.u32 %v1261, 7
      %v1263 = vsub.s32 0, %v1262
      %v1264 = vrot.slane %v1259, %v1263
      %v1265 = vlaneseq
      %v1266 = vshrl.u32 %v1265, 7
      %v1267 = vsub.s32 1, %v1266
      %v1268 = vrot.slane %v1259, %v1267
      %v1271 = vmul.f32 %v1253, %v1264
      %v1272 = vmul.f32 %v1257, %v1268
      %v1274 = vsel %vm416, %v766, 0
      %1276 = vmatprep.subr.mxu0 %v1272
      %1277 = vmatpush1.msra.mxu0 %v1271
      %1278 = vmatprep.subr.mxu0 0.0
      %1279 = vmatpush1.msra.mxu0 0.0
      %1280 = vmatprep.subr.mxu0 0.0
      %1281 = vmatpush1.msra.mxu0 0.0
      %1282 = vmatprep.subr.mxu0 0.0
      %1283 = vmatpush1.msra.mxu0 0.0
      %1284 = vmatprep.subr.mxu0 0.0
      %1285 = vmatpush1.msra.mxu0 0.0
      %1286 = vmatprep.subr.mxu0 0.0
      %1287 = vmatpush1.msra.mxu0 0.0
      %1288 = vmatprep.subr.mxu0 0.0
      %1289 = vmatpush1.msra.mxu0 0.0
      %1290 = vmatprep.subr.mxu0 0.0
      %1291 = vmatpush1.msra.mxu0 0.0
      %1292 = vmatprep.subr.mxu0 0.0
      %1293 = vmatpush1.msra.mxu0 0.0
      %1294 = vmatprep.subr.mxu0 0.0
      %1295 = vmatpush1.msra.mxu0 0.0
      %1296 = vmatprep.subr.mxu0 0.0
      %1297 = vmatpush1.msra.mxu0 0.0
      %1298 = vmatprep.subr.mxu0 0.0
      %1299 = vmatpush1.msra.mxu0 0.0
      %1300 = vmatprep.subr.mxu0 0.0
      %1301 = vmatpush1.msra.mxu0 0.0
      %1302 = vmatprep.subr.mxu0 0.0
      %1303 = vmatpush1.msra.mxu0 0.0
      %1304 = vmatprep.subr.mxu0 0.0
      %1305 = vmatpush1.msra.mxu0 0.0
      %1306 = vmatprep.subr.mxu0 0.0
      %1307 = vmatpush1.msra.mxu0 0.0
      %1308 = vmatprep.subr.mxu0 0.0
      %1309 = vmatpush1.msra.mxu0 0.0
      %1310 = vmatprep.subr.mxu0 0.0
      %1311 = vmatpush1.msra.mxu0 0.0
      %1312 = vmatprep.subr.mxu0 0.0
      %1313 = vmatpush1.msra.mxu0 0.0
      %1314 = vmatprep.subr.mxu0 0.0
      %1315 = vmatpush1.msra.mxu0 0.0
      %1316 = vmatprep.subr.mxu0 0.0
      %1317 = vmatpush1.msra.mxu0 0.0
      %1318 = vmatprep.subr.mxu0 0.0
      %1319 = vmatpush1.msra.mxu0 0.0
      %1320 = vmatprep.subr.mxu0 0.0
      %1321 = vmatpush1.msra.mxu0 0.0
      %1322 = vmatprep.subr.mxu0 0.0
      %1323 = vmatpush1.msra.mxu0 0.0
      %1324 = vmatprep.subr.mxu0 0.0
      %1325 = vmatpush1.msra.mxu0 0.0
      %1326 = vmatprep.subr.mxu0 0.0
      %1327 = vmatpush1.msra.mxu0 0.0
      %1328 = vmatprep.subr.mxu0 0.0
      %1329 = vmatpush1.msra.mxu0 0.0
      %1330 = vmatprep.subr.mxu0 0.0
      %1331 = vmatpush1.msra.mxu0 0.0
      %1332 = vmatprep.subr.mxu0 0.0
      %1333 = vmatpush1.msra.mxu0 0.0
      %1334 = vmatprep.subr.mxu0 0.0
      %1335 = vmatpush1.msra.mxu0 0.0
      %1336 = vmatprep.subr.mxu0 0.0
      %1337 = vmatpush1.msra.mxu0 0.0
      %1338 = vmatprep.subr.mxu0 0.0
      %1339 = vmatpush1.msra.mxu0 0.0
      %1340 = vmatprep.mubr.f32.mxu0 0.0
      %1341 = vmatmul.mubr.f32.gmra.mrb[0].mxu0 %v1274
      %v1342 = vpop.f32.mrb[0].mxu0
      %v1343 = vadd.f32 0.0, %v1342
      %v1344 = vpop.f32.mrb[0].mxu0
      %v1345 = vadd.f32 0.0, %v1344
      %1346 = vdwg.mxu0
      %v1347 = vadd.f32 %v1246, %v1343
      %v1348 = vadd.f32 %v1247, %v1345
      %1349 = vrot.lane.b32.xlu0 %v759, 113
      %v1350 = vpop.permute.xlu0 %1349
      %1351 = vrot.lane.b32.xlu0 %v760, 113
      %v1352 = vpop.permute.xlu0 %1351
      %vm1353 = vcmask 924672
      %v1354 = vsel %vm1353, %v1350, %v1352
      %v1358 = vsel %vm1353, %v1352, %v1350
      %s1359 = scalar_lea.vmem %s1, 6
      %v1360 = vld [vmem:[%s1359] ss:$8 sm:$0x3]
      %v1362 = vlaneseq
      %v1363 = vshrl.u32 %v1362, 7
      %v1364 = vsub.s32 0, %v1363
      %v1365 = vrot.slane %v1360, %v1364
      %v1366 = vlaneseq
      %v1367 = vshrl.u32 %v1366, 7
      %v1368 = vsub.s32 1, %v1367
      %v1369 = vrot.slane %v1360, %v1368
      %v1372 = vmul.f32 %v1354, %v1365
      %v1373 = vmul.f32 %v1358, %v1369
      %v1375 = vsel %vm416, %v767, 0
      %1377 = vmatprep.subr.mxu0 %v1373
      %1378 = vmatpush1.msra.mxu0 %v1372
      %1379 = vmatprep.subr.mxu0 0.0
      %1380 = vmatpush1.msra.mxu0 0.0
      %1381 = vmatprep.subr.mxu0 0.0
      %1382 = vmatpush1.msra.mxu0 0.0
      %1383 = vmatprep.subr.mxu0 0.0
      %1384 = vmatpush1.msra.mxu0 0.0
      %1385 = vmatprep.subr.mxu0 0.0
      %1386 = vmatpush1.msra.mxu0 0.0
      %1387 = vmatprep.subr.mxu0 0.0
      %1388 = vmatpush1.msra.mxu0 0.0
      %1389 = vmatprep.subr.mxu0 0.0
      %1390 = vmatpush1.msra.mxu0 0.0
      %1391 = vmatprep.subr.mxu0 0.0
      %1392 = vmatpush1.msra.mxu0 0.0
      %1393 = vmatprep.subr.mxu0 0.0
      %1394 = vmatpush1.msra.mxu0 0.0
      %1395 = vmatprep.subr.mxu0 0.0
      %1396 = vmatpush1.msra.mxu0 0.0
      %1397 = vmatprep.subr.mxu0 0.0
      %1398 = vmatpush1.msra.mxu0 0.0
      %1399 = vmatprep.subr.mxu0 0.0
      %1400 = vmatpush1.msra.mxu0 0.0
      %1401 = vmatprep.subr.mxu0 0.0
      %1402 = vmatpush1.msra.mxu0 0.0
      %1403 = vmatprep.subr.mxu0 0.0
      %1404 = vmatpush1.msra.mxu0 0.0
      %1405 = vmatprep.subr.mxu0 0.0
      %1406 = vmatpush1.msra.mxu0 0.0
      %1407 = vmatprep.subr.mxu0 0.0
      %1408 = vmatpush1.msra.mxu0 0.0
      %1409 = vmatprep.subr.mxu0 0.0
      %1410 = vmatpush1.msra.mxu0 0.0
      %1411 = vmatprep.subr.mxu0 0.0
      %1412 = vmatpush1.msra.mxu0 0.0
      %1413 = vmatprep.subr.mxu0 0.0
      %1414 = vmatpush1.msra.mxu0 0.0
      %1415 = vmatprep.subr.mxu0 0.0
      %1416 = vmatpush1.msra.mxu0 0.0
      %1417 = vmatprep.subr.mxu0 0.0
      %1418 = vmatpush1.msra.mxu0 0.0
      %1419 = vmatprep.subr.mxu0 0.0
      %1420 = vmatpush1.msra.mxu0 0.0
      %1421 = vmatprep.subr.mxu0 0.0
      %1422 = vmatpush1.msra.mxu0 0.0
      %1423 = vmatprep.subr.mxu0 0.0
      %1424 = vmatpush1.msra.mxu0 0.0
      %1425 = vmatprep.subr.mxu0 0.0
      %1426 = vmatpush1.msra.mxu0 0.0
      %1427 = vmatprep.subr.mxu0 0.0
      %1428 = vmatpush1.msra.mxu0 0.0
      %1429 = vmatprep.subr.mxu0 0.0
      %1430 = vmatpush1.msra.mxu0 0.0
      %1431 = vmatprep.subr.mxu0 0.0
      %1432 = vmatpush1.msra.mxu0 0.0
      %1433 = vmatprep.subr.mxu0 0.0
      %1434 = vmatpush1.msra.mxu0 0.0
      %1435 = vmatprep.subr.mxu0 0.0
      %1436 = vmatpush1.msra.mxu0 0.0
      %1437 = vmatprep.subr.mxu0 0.0
      %1438 = vmatpush1.msra.mxu0 0.0
      %1439 = vmatprep.subr.mxu0 0.0
      %1440 = vmatpush1.msra.mxu0 0.0
      %1441 = vmatprep.mubr.f32.mxu0 0.0
      %1442 = vmatmul.mubr.f32.gmra.mrb[0].mxu0 %v1375
      %v1443 = vpop.f32.mrb[0].mxu0
      %v1444 = vadd.f32 0.0, %v1443
      %v1445 = vpop.f32.mrb[0].mxu0
      %v1446 = vadd.f32 0.0, %v1445
      %1447 = vdwg.mxu0
      %v1448 = vadd.f32 %v1347, %v1444
      %v1449 = vadd.f32 %v1348, %v1446
      %1450 = vrot.lane.b32.xlu0 %v759, 112
      %v1451 = vpop.permute.xlu0 %1450
      %1452 = vrot.lane.b32.xlu0 %v760, 112
      %v1453 = vpop.permute.xlu0 %1452
      %vm1454 = vcmask 916480
      %v1455 = vsel %vm1454, %v1451, %v1453
      %v1459 = vsel %vm1454, %v1453, %v1451
      %s1460 = scalar_lea.vmem %s1, 7
      %v1461 = vld [vmem:[%s1460] ss:$8 sm:$0x3]
      %v1463 = vlaneseq
      %v1464 = vshrl.u32 %v1463, 7
      %v1465 = vsub.s32 0, %v1464
      %v1466 = vrot.slane %v1461, %v1465
      %v1467 = vlaneseq
      %v1468 = vshrl.u32 %v1467, 7
      %v1469 = vsub.s32 1, %v1468
      %v1470 = vrot.slane %v1461, %v1469
      %v1473 = vmul.f32 %v1455, %v1466
      %v1474 = vmul.f32 %v1459, %v1470
      %v1476 = vsel %vm416, %v768, 0
      %1478 = vmatprep.subr.mxu0 %v1474
      %1479 = vmatpush1.msra.mxu0 %v1473
      %1480 = vmatprep.subr.mxu0 0.0
      %1481 = vmatpush1.msra.mxu0 0.0
      %1482 = vmatprep.subr.mxu0 0.0
      %1483 = vmatpush1.msra.mxu0 0.0
      %1484 = vmatprep.subr.mxu0 0.0
      %1485 = vmatpush1.msra.mxu0 0.0
      %1486 = vmatprep.subr.mxu0 0.0
      %1487 = vmatpush1.msra.mxu0 0.0
      %1488 = vmatprep.subr.mxu0 0.0
      %1489 = vmatpush1.msra.mxu0 0.0
      %1490 = vmatprep.subr.mxu0 0.0
      %1491 = vmatpush1.msra.mxu0 0.0
      %1492 = vmatprep.subr.mxu0 0.0
      %1493 = vmatpush1.msra.mxu0 0.0
      %1494 = vmatprep.subr.mxu0 0.0
      %1495 = vmatpush1.msra.mxu0 0.0
      %1496 = vmatprep.subr.mxu0 0.0
      %1497 = vmatpush1.msra.mxu0 0.0
      %1498 = vmatprep.subr.mxu0 0.0
      %1499 = vmatpush1.msra.mxu0 0.0
      %1500 = vmatprep.subr.mxu0 0.0
      %1501 = vmatpush1.msra.mxu0 0.0
      %1502 = vmatprep.subr.mxu0 0.0
      %1503 = vmatpush1.msra.mxu0 0.0
      %1504 = vmatprep.subr.mxu0 0.0
      %1505 = vmatpush1.msra.mxu0 0.0
      %1506 = vmatprep.subr.mxu0 0.0
      %1507 = vmatpush1.msra.mxu0 0.0
      %1508 = vmatprep.subr.mxu0 0.0
      %1509 = vmatpush1.msra.mxu0 0.0
      %1510 = vmatprep.subr.mxu0 0.0
      %1511 = vmatpush1.msra.mxu0 0.0
      %1512 = vmatprep.subr.mxu0 0.0
      %1513 = vmatpush1.msra.mxu0 0.0
      %1514 = vmatprep.subr.mxu0 0.0
      %1515 = vmatpush1.msra.mxu0 0.0
      %1516 = vmatprep.subr.mxu0 0.0
      %1517 = vmatpush1.msra.mxu0 0.0
      %1518 = vmatprep.subr.mxu0 0.0
      %1519 = vmatpush1.msra.mxu0 0.0
      %1520 = vmatprep.subr.mxu0 0.0
      %1521 = vmatpush1.msra.mxu0 0.0
      %1522 = vmatprep.subr.mxu0 0.0
      %1523 = vmatpush1.msra.mxu0 0.0
      %1524 = vmatprep.subr.mxu0 0.0
      %1525 = vmatpush1.msra.mxu0 0.0
      %1526 = vmatprep.subr.mxu0 0.0
      %1527 = vmatpush1.msra.mxu0 0.0
      %1528 = vmatprep.subr.mxu0 0.0
      %1529 = vmatpush1.msra.mxu0 0.0
      %1530 = vmatprep.subr.mxu0 0.0
      %1531 = vmatpush1.msra.mxu0 0.0
      %1532 = vmatprep.subr.mxu0 0.0
      %1533 = vmatpush1.msra.mxu0 0.0
      %1534 = vmatprep.subr.mxu0 0.0
      %1535 = vmatpush1.msra.mxu0 0.0
      %1536 = vmatprep.subr.mxu0 0.0
      %1537 = vmatpush1.msra.mxu0 0.0
      %1538 = vmatprep.subr.mxu0 0.0
      %1539 = vmatpush1.msra.mxu0 0.0
      %1540 = vmatprep.subr.mxu0 0.0
      %1541 = vmatpush1.msra.mxu0 0.0
      %1542 = vmatprep.mubr.f32.mxu0 0.0
      %1543 = vmatmul.mubr.f32.gmra.mrb[0].mxu0 %v1476
      %v1544 = vpop.f32.mrb[0].mxu0
      %v1545 = vadd.f32 0.0, %v1544
      %v1546 = vpop.f32.mrb[0].mxu0
      %v1547 = vadd.f32 0.0, %v1546
      %1548 = vdwg.mxu0
      %v1549 = vadd.f32 %v1448, %v1545
      %v1550 = vadd.f32 %v1449, %v1547
      %1551 = vrot.lane.b32.xlu0 %v759, 111
      %v1552 = vpop.permute.xlu0 %1551
      %1553 = vrot.lane.b32.xlu0 %v760, 111
      %v1554 = vpop.permute.xlu0 %1553
      %vm1555 = vcmask 908288
      %v1556 = vsel %vm1555, %v1552, %v1554
      %v1560 = vsel %vm1555, %v1554, %v1552
      %s1561 = scalar_lea.vmem %s1, 16
      %v1562 = vld [vmem:[%s1561] ss:$8 sm:$0x3]
      %v1564 = vlaneseq
      %v1565 = vshrl.u32 %v1564, 7
      %v1566 = vsub.s32 0, %v1565
      %v1567 = vrot.slane %v1562, %v1566
      %v1568 = vlaneseq
      %v1569 = vshrl.u32 %v1568, 7
      %v1570 = vsub.s32 1, %v1569
      %v1571 = vrot.slane %v1562, %v1570
      %v1574 = vmul.f32 %v1556, %v1567
      %v1575 = vmul.f32 %v1560, %v1571
      %v1577 = vsel %vm416, %v769, 0
      %1579 = vmatprep.subr.mxu0 %v1575
      %1580 = vmatpush1.msra.mxu0 %v1574
      %1581 = vmatprep.subr.mxu0 0.0
      %1582 = vmatpush1.msra.mxu0 0.0
      %1583 = vmatprep.subr.mxu0 0.0
      %1584 = vmatpush1.msra.mxu0 0.0
      %1585 = vmatprep.subr.mxu0 0.0
      %1586 = vmatpush1.msra.mxu0 0.0
      %1587 = vmatprep.subr.mxu0 0.0
      %1588 = vmatpush1.msra.mxu0 0.0
      %1589 = vmatprep.subr.mxu0 0.0
      %1590 = vmatpush1.msra.mxu0 0.0
      %1591 = vmatprep.subr.mxu0 0.0
      %1592 = vmatpush1.msra.mxu0 0.0
      %1593 = vmatprep.subr.mxu0 0.0
      %1594 = vmatpush1.msra.mxu0 0.0
      %1595 = vmatprep.subr.mxu0 0.0
      %1596 = vmatpush1.msra.mxu0 0.0
      %1597 = vmatprep.subr.mxu0 0.0
      %1598 = vmatpush1.msra.mxu0 0.0
      %1599 = vmatprep.subr.mxu0 0.0
      %1600 = vmatpush1.msra.mxu0 0.0
      %1601 = vmatprep.subr.mxu0 0.0
      %1602 = vmatpush1.msra.mxu0 0.0
      %1603 = vmatprep.subr.mxu0 0.0
      %1604 = vmatpush1.msra.mxu0 0.0
      %1605 = vmatprep.subr.mxu0 0.0
      %1606 = vmatpush1.msra.mxu0 0.0
      %1607 = vmatprep.subr.mxu0 0.0
      %1608 = vmatpush1.msra.mxu0 0.0
      %1609 = vmatprep.subr.mxu0 0.0
      %1610 = vmatpush1.msra.mxu0 0.0
      %1611 = vmatprep.subr.mxu0 0.0
      %1612 = vmatpush1.msra.mxu0 0.0
      %1613 = vmatprep.subr.mxu0 0.0
      %1614 = vmatpush1.msra.mxu0 0.0
      %1615 = vmatprep.subr.mxu0 0.0
      %1616 = vmatpush1.msra.mxu0 0.0
      %1617 = vmatprep.subr.mxu0 0.0
      %1618 = vmatpush1.msra.mxu0 0.0
      %1619 = vmatprep.subr.mxu0 0.0
      %1620 = vmatpush1.msra.mxu0 0.0
      %1621 = vmatprep.subr.mxu0 0.0
      %1622 = vmatpush1.msra.mxu0 0.0
      %1623 = vmatprep.subr.mxu0 0.0
      %1624 = vmatpush1.msra.mxu0 0.0
      %1625 = vmatprep.subr.mxu0 0.0
      %1626 = vmatpush1.msra.mxu0 0.0
      %1627 = vmatprep.subr.mxu0 0.0
      %1628 = vmatpush1.msra.mxu0 0.0
      %1629 = vmatprep.subr.mxu0 0.0
      %1630 = vmatpush1.msra.mxu0 0.0
      %1631 = vmatprep.subr.mxu0 0.0
      %1632 = vmatpush1.msra.mxu0 0.0
      %1633 = vmatprep.subr.mxu0 0.0
      %1634 = vmatpush1.msra.mxu0 0.0
      %1635 = vmatprep.subr.mxu0 0.0
      %1636 = vmatpush1.msra.mxu0 0.0
      %1637 = vmatprep.subr.mxu0 0.0
      %1638 = vmatpush1.msra.mxu0 0.0
      %1639 = vmatprep.subr.mxu0 0.0
      %1640 = vmatpush1.msra.mxu0 0.0
      %1641 = vmatprep.subr.mxu0 0.0
      %1642 = vmatpush1.msra.mxu0 0.0
      %1643 = vmatprep.mubr.f32.mxu0 0.0
      %1644 = vmatmul.mubr.f32.gmra.mrb[0].mxu0 %v1577
      %v1645 = vpop.f32.mrb[0].mxu0
      %v1646 = vadd.f32 0.0, %v1645
      %v1647 = vpop.f32.mrb[0].mxu0
      %v1648 = vadd.f32 0.0, %v1647
      %1649 = vdwg.mxu0
      %v1650 = vadd.f32 %v1549, %v1646
      %v1651 = vadd.f32 %v1550, %v1648
      %1653 = vset.pattern.permute.xlu0 0
      %1654 = vperm.xlu0 %1653, %v770
      %v1655 = vpop.permute.xlu0 %1654
      %v1657 = vadd.f32 %v1650, %v1655
      %v1658 = vadd.f32 %v1651, %v1655
      %v1659 = vmax.f32 %v1657, 0.0
      %v1660 = vmax.f32 %v1658, 0.0
      %v1661 = vld [vmem:[%s8] sm:$0xf]
      %v1662 = vld [vmem:[%s8 + $0x4] sm:$0xf]
      %v1663 = vld [vmem:[%s8 + $0x8] sm:$0xf]
      %v1664 = vld [vmem:[%s8 + $0xc] sm:$0xf]
      %v1665 = vld [vmem:[%s8 + $0x10] sm:$0xf]
      %v1666 = vld [vmem:[%s8 + $0x14] sm:$0xf]
      %v1667 = vld [vmem:[%s8 + $0x18] sm:$0xf]
      %v1668 = vld [vmem:[%s8 + $0x1c] sm:$0xf]
      %v1669 = vld [vmem:[%s8 + $0x20] sm:$0xf]
      %v1670 = vld [vmem:[%s9] sm:$0xf]
      %1672 = vrot.lane.b32.xlu0 %v1660, 17
      %v1673 = vpop.permute.xlu0 %1672
      %1676 = vrot.lane.b32.xlu0 %v1659, 17
      %v1677 = vpop.permute.xlu0 %1676
      %v1678 = vsel %vm778, %v1677, %v1673
      %v1681 = vsel %vm778, %v1673, %v1677
      %v1682 = vmul.f32 %v1681, %v788
      %v1683 = vmul.f32 %v1678, %v792
      %1684 = vrot.lane.b32.xlu0 %v1660, 16
      %v1685 = vpop.permute.xlu0 %1684
      %1687 = vrot.lane.b32.xlu0 %v1659, 16
      %v1688 = vpop.permute.xlu0 %1687
      %v1689 = vsel %vm802, %v1688, %v1685
      %v1692 = vsel %vm802, %v1685, %v1688
      %v1693 = vmul.f32 %v1692, %v813
      %v1694 = vmul.f32 %v1689, %v817
      %vm1695 = vcmask 31744
      %v1697 = vsel %vm1695, %v1662, 0
      %v1700 = vsel %vm758, %v1693, 0
      %v1703 = vsel %vm758, %v1694, 0
      %1705 = vmatprep.subr.mxu0 %v1703
      %1706 = vmatpush1.msra.mxu0 %v1700
      %1707 = vmatprep.subr.mxu0 0.0
      %1708 = vmatpush1.msra.mxu0 0.0
      %1709 = vmatprep.subr.mxu0 0.0
      %1710 = vmatpush1.msra.mxu0 0.0
      %1711 = vmatprep.subr.mxu0 0.0
      %1712 = vmatpush1.msra.mxu0 0.0
      %1713 = vmatprep.subr.mxu0 0.0
      %1714 = vmatpush1.msra.mxu0 0.0
      %1715 = vmatprep.subr.mxu0 0.0
      %1716 = vmatpush1.msra.mxu0 0.0
      %1717 = vmatprep.subr.mxu0 0.0
      %1718 = vmatpush1.msra.mxu0 0.0
      %1719 = vmatprep.subr.mxu0 0.0
      %1720 = vmatpush1.msra.mxu0 0.0
      %1721 = vmatprep.subr.mxu0 0.0
      %1722 = vmatpush1.msra.mxu0 0.0
      %1723 = vmatprep.subr.mxu0 0.0
      %1724 = vmatpush1.msra.mxu0 0.0
      %1725 = vmatprep.subr.mxu0 0.0
      %1726 = vmatpush1.msra.mxu0 0.0
      %1727 = vmatprep.subr.mxu0 0.0
      %1728 = vmatpush1.msra.mxu0 0.0
      %1729 = vmatprep.subr.mxu0 0.0
      %1730 = vmatpush1.msra.mxu0 0.0
      %1731 = vmatprep.subr.mxu0 0.0
      %1732 = vmatpush1.msra.mxu0 0.0
      %1733 = vmatprep.subr.mxu0 0.0
      %1734 = vmatpush1.msra.mxu0 0.0
      %1735 = vmatprep.subr.mxu0 0.0
      %1736 = vmatpush1.msra.mxu0 0.0
      %1737 = vmatprep.subr.mxu0 0.0
      %1738 = vmatpush1.msra.mxu0 0.0
      %1739 = vmatprep.subr.mxu0 0.0
      %1740 = vmatpush1.msra.mxu0 0.0
      %1741 = vmatprep.subr.mxu0 0.0
      %1742 = vmatpush1.msra.mxu0 0.0
      %1743 = vmatprep.subr.mxu0 0.0
      %1744 = vmatpush1.msra.mxu0 0.0
      %1745 = vmatprep.subr.mxu0 0.0
      %1746 = vmatpush1.msra.mxu0 0.0
      %1747 = vmatprep.subr.mxu0 0.0
      %1748 = vmatpush1.msra.mxu0 0.0
      %1749 = vmatprep.subr.mxu0 0.0
      %1750 = vmatpush1.msra.mxu0 0.0
      %1751 = vmatprep.subr.mxu0 0.0
      %1752 = vmatpush1.msra.mxu0 0.0
      %1753 = vmatprep.subr.mxu0 0.0
      %1754 = vmatpush1.msra.mxu0 0.0
      %1755 = vmatprep.subr.mxu0 0.0
      %1756 = vmatpush1.msra.mxu0 0.0
      %1757 = vmatprep.subr.mxu0 0.0
      %1758 = vmatpush1.msra.mxu0 0.0
      %1759 = vmatprep.subr.mxu0 0.0
      %1760 = vmatpush1.msra.mxu0 0.0
      %1761 = vmatprep.subr.mxu0 0.0
      %1762 = vmatpush1.msra.mxu0 0.0
      %1763 = vmatprep.subr.mxu0 0.0
      %1764 = vmatpush1.msra.mxu0 0.0
      %1765 = vmatprep.subr.mxu0 0.0
      %1766 = vmatpush1.msra.mxu0 0.0
      %1767 = vmatprep.subr.mxu0 0.0
      %1768 = vmatpush1.msra.mxu0 0.0
      %1769 = vmatprep.mubr.f32.mxu0 0.0
      %1770 = vmatmul.mubr.f32.gmra.mrb[0].mxu0 %v1697
      %v1771 = vpop.f32.mrb[0].mxu0
      %v1772 = vadd.f32 0.0, %v1771
      %v1773 = vpop.f32.mrb[0].mxu0
      %v1774 = vadd.f32 0.0, %v1773
      %1775 = vdwg.mxu0
      %v1777 = vsel %vm1695, %v1661, 0
      %v1780 = vsel %vm758, %v1682, 0
      %v1783 = vsel %vm758, %v1683, 0
      %1785 = vmatprep.subr.mxu0 %v1783
      %1786 = vmatpush1.msra.mxu0 %v1780
      %1787 = vmatprep.subr.mxu0 0.0
      %1788 = vmatpush1.msra.mxu0 0.0
      %1789 = vmatprep.subr.mxu0 0.0
      %1790 = vmatpush1.msra.mxu0 0.0
      %1791 = vmatprep.subr.mxu0 0.0
      %1792 = vmatpush1.msra.mxu0 0.0
      %1793 = vmatprep.subr.mxu0 0.0
      %1794 = vmatpush1.msra.mxu0 0.0
      %1795 = vmatprep.subr.mxu0 0.0
      %1796 = vmatpush1.msra.mxu0 0.0
      %1797 = vmatprep.subr.mxu0 0.0
      %1798 = vmatpush1.msra.mxu0 0.0
      %1799 = vmatprep.subr.mxu0 0.0
      %1800 = vmatpush1.msra.mxu0 0.0
      %1801 = vmatprep.subr.mxu0 0.0
      %1802 = vmatpush1.msra.mxu0 0.0
      %1803 = vmatprep.subr.mxu0 0.0
      %1804 = vmatpush1.msra.mxu0 0.0
      %1805 = vmatprep.subr.mxu0 0.0
      %1806 = vmatpush1.msra.mxu0 0.0
      %1807 = vmatprep.subr.mxu0 0.0
      %1808 = vmatpush1.msra.mxu0 0.0
      %1809 = vmatprep.subr.mxu0 0.0
      %1810 = vmatpush1.msra.mxu0 0.0
      %1811 = vmatprep.subr.mxu0 0.0
      %1812 = vmatpush1.msra.mxu0 0.0
      %1813 = vmatprep.subr.mxu0 0.0
      %1814 = vmatpush1.msra.mxu0 0.0
      %1815 = vmatprep.subr.mxu0 0.0
      %1816 = vmatpush1.msra.mxu0 0.0
      %1817 = vmatprep.subr.mxu0 0.0
      %1818 = vmatpush1.msra.mxu0 0.0
      %1819 = vmatprep.subr.mxu0 0.0
      %1820 = vmatpush1.msra.mxu0 0.0
      %1821 = vmatprep.subr.mxu0 0.0
      %1822 = vmatpush1.msra.mxu0 0.0
      %1823 = vmatprep.subr.mxu0 0.0
      %1824 = vmatpush1.msra.mxu0 0.0
      %1825 = vmatprep.subr.mxu0 0.0
      %1826 = vmatpush1.msra.mxu0 0.0
      %1827 = vmatprep.subr.mxu0 0.0
      %1828 = vmatpush1.msra.mxu0 0.0
      %1829 = vmatprep.subr.mxu0 0.0
      %1830 = vmatpush1.msra.mxu0 0.0
      %1831 = vmatprep.subr.mxu0 0.0
      %1832 = vmatpush1.msra.mxu0 0.0
      %1833 = vmatprep.subr.mxu0 0.0
      %1834 = vmatpush1.msra.mxu0 0.0
      %1835 = vmatprep.subr.mxu0 0.0
      %1836 = vmatpush1.msra.mxu0 0.0
      %1837 = vmatprep.subr.mxu0 0.0
      %1838 = vmatpush1.msra.mxu0 0.0
      %1839 = vmatprep.subr.mxu0 0.0
      %1840 = vmatpush1.msra.mxu0 0.0
      %1841 = vmatprep.subr.mxu0 0.0
      %1842 = vmatpush1.msra.mxu0 0.0
      %1843 = vmatprep.subr.mxu0 0.0
      %1844 = vmatpush1.msra.mxu0 0.0
      %1845 = vmatprep.subr.mxu0 0.0
      %1846 = vmatpush1.msra.mxu0 0.0
      %1847 = vmatprep.subr.mxu0 0.0
      %1848 = vmatpush1.msra.mxu0 0.0
      %1849 = vmatprep.mubr.f32.mxu0 0.0
      %1850 = vmatmul.mubr.f32.gmra.mrb[0].mxu0 %v1777
      %v1851 = vpop.f32.mrb[0].mxu0
      %v1852 = vadd.f32 %v1772, %v1851
      %v1853 = vpop.f32.mrb[0].mxu0
      %v1854 = vadd.f32 %v1774, %v1853
      %1855 = vdwg.mxu0
      %1856 = vrot.lane.b32.xlu0 %v1660, 15
      %v1857 = vpop.permute.xlu0 %1856
      %1859 = vrot.lane.b32.xlu0 %v1659, 15
      %v1860 = vpop.permute.xlu0 %1859
      %v1861 = vsel %vm975, %v1860, %v1857
      %v1864 = vsel %vm975, %v1857, %v1860
      %v1865 = vmul.f32 %v1864, %v986
      %v1866 = vmul.f32 %v1861, %v990
      %v1868 = vsel %vm1695, %v1663, 0
      %v1871 = vsel %vm758, %v1865, 0
      %v1874 = vsel %vm758, %v1866, 0
      %1876 = vmatprep.subr.mxu0 %v1874
      %1877 = vmatpush1.msra.mxu0 %v1871
      %1878 = vmatprep.subr.mxu0 0.0
      %1879 = vmatpush1.msra.mxu0 0.0
      %1880 = vmatprep.subr.mxu0 0.0
      %1881 = vmatpush1.msra.mxu0 0.0
      %1882 = vmatprep.subr.mxu0 0.0
      %1883 = vmatpush1.msra.mxu0 0.0
      %1884 = vmatprep.subr.mxu0 0.0
      %1885 = vmatpush1.msra.mxu0 0.0
      %1886 = vmatprep.subr.mxu0 0.0
      %1887 = vmatpush1.msra.mxu0 0.0
      %1888 = vmatprep.subr.mxu0 0.0
      %1889 = vmatpush1.msra.mxu0 0.0
      %1890 = vmatprep.subr.mxu0 0.0
      %1891 = vmatpush1.msra.mxu0 0.0
      %1892 = vmatprep.subr.mxu0 0.0
      %1893 = vmatpush1.msra.mxu0 0.0
      %1894 = vmatprep.subr.mxu0 0.0
      %1895 = vmatpush1.msra.mxu0 0.0
      %1896 = vmatprep.subr.mxu0 0.0
      %1897 = vmatpush1.msra.mxu0 0.0
      %1898 = vmatprep.subr.mxu0 0.0
      %1899 = vmatpush1.msra.mxu0 0.0
      %1900 = vmatprep.subr.mxu0 0.0
      %1901 = vmatpush1.msra.mxu0 0.0
      %1902 = vmatprep.subr.mxu0 0.0
      %1903 = vmatpush1.msra.mxu0 0.0
      %1904 = vmatprep.subr.mxu0 0.0
      %1905 = vmatpush1.msra.mxu0 0.0
      %1906 = vmatprep.subr.mxu0 0.0
      %1907 = vmatpush1.msra.mxu0 0.0
      %1908 = vmatprep.subr.mxu0 0.0
      %1909 = vmatpush1.msra.mxu0 0.0
      %1910 = vmatprep.subr.mxu0 0.0
      %1911 = vmatpush1.msra.mxu0 0.0
      %1912 = vmatprep.subr.mxu0 0.0
      %1913 = vmatpush1.msra.mxu0 0.0
      %1914 = vmatprep.subr.mxu0 0.0
      %1915 = vmatpush1.msra.mxu0 0.0
      %1916 = vmatprep.subr.mxu0 0.0
      %1917 = vmatpush1.msra.mxu0 0.0
      %1918 = vmatprep.subr.mxu0 0.0
      %1919 = vmatpush1.msra.mxu0 0.0
      %1920 = vmatprep.subr.mxu0 0.0
      %1921 = vmatpush1.msra.mxu0 0.0
      %1922 = vmatprep.subr.mxu0 0.0
      %1923 = vmatpush1.msra.mxu0 0.0
      %1924 = vmatprep.subr.mxu0 0.0
      %1925 = vmatpush1.msra.mxu0 0.0
      %1926 = vmatprep.subr.mxu0 0.0
      %1927 = vmatpush1.msra.mxu0 0.0
      %1928 = vmatprep.subr.mxu0 0.0
      %1929 = vmatpush1.msra.mxu0 0.0
      %1930 = vmatprep.subr.mxu0 0.0
      %1931 = vmatpush1.msra.mxu0 0.0
      %1932 = vmatprep.subr.mxu0 0.0
      %1933 = vmatpush1.msra.mxu0 0.0
      %1934 = vmatprep.subr.mxu0 0.0
      %1935 = vmatpush1.msra.mxu0 0.0
      %1936 = vmatprep.subr.mxu0 0.0
      %1937 = vmatpush1.msra.mxu0 0.0
      %1938 = vmatprep.subr.mxu0 0.0
      %1939 = vmatpush1.msra.mxu0 0.0
      %1940 = vmatprep.mubr.f32.mxu0 0.0
      %1941 = vmatmul.mubr.f32.gmra.mrb[0].mxu0 %v1868
      %v1942 = vpop.f32.mrb[0].mxu0
      %v1943 = vadd.f32 0.0, %v1942
      %v1944 = vpop.f32.mrb[0].mxu0
      %v1945 = vadd.f32 0.0, %v1944
      %1946 = vdwg.mxu0
      %v1947 = vadd.f32 %v1852, %v1943
      %v1948 = vadd.f32 %v1854, %v1945
      %1949 = vrot.lane.b32.xlu0 %v1660, 1
      %v1950 = vpop.permute.xlu0 %1949
      %1952 = vrot.lane.b32.xlu0 %v1659, 1
      %v1953 = vpop.permute.xlu0 %1952
      %v1954 = vsel %vm1076, %v1953, %v1950
      %v1957 = vsel %vm1076, %v1950, %v1953
      %v1958 = vmul.f32 %v1957, %v1087
      %v1959 = vmul.f32 %v1954, %v1091
      %v1961 = vsel %vm1695, %v1664, 0
      %v1964 = vsel %vm758, %v1958, 0
      %v1967 = vsel %vm758, %v1959, 0
      %1969 = vmatprep.subr.mxu0 %v1967
      %1970 = vmatpush1.msra.mxu0 %v1964
      %1971 = vmatprep.subr.mxu0 0.0
      %1972 = vmatpush1.msra.mxu0 0.0
      %1973 = vmatprep.subr.mxu0 0.0
      %1974 = vmatpush1.msra.mxu0 0.0
      %1975 = vmatprep.subr.mxu0 0.0
      %1976 = vmatpush1.msra.mxu0 0.0
      %1977 = vmatprep.subr.mxu0 0.0
      %1978 = vmatpush1.msra.mxu0 0.0
      %1979 = vmatprep.subr.mxu0 0.0
      %1980 = vmatpush1.msra.mxu0 0.0
      %1981 = vmatprep.subr.mxu0 0.0
      %1982 = vmatpush1.msra.mxu0 0.0
      %1983 = vmatprep.subr.mxu0 0.0
      %1984 = vmatpush1.msra.mxu0 0.0
      %1985 = vmatprep.subr.mxu0 0.0
      %1986 = vmatpush1.msra.mxu0 0.0
      %1987 = vmatprep.subr.mxu0 0.0
      %1988 = vmatpush1.msra.mxu0 0.0
      %1989 = vmatprep.subr.mxu0 0.0
      %1990 = vmatpush1.msra.mxu0 0.0
      %1991 = vmatprep.subr.mxu0 0.0
      %1992 = vmatpush1.msra.mxu0 0.0
      %1993 = vmatprep.subr.mxu0 0.0
      %1994 = vmatpush1.msra.mxu0 0.0
      %1995 = vmatprep.subr.mxu0 0.0
      %1996 = vmatpush1.msra.mxu0 0.0
      %1997 = vmatprep.subr.mxu0 0.0
      %1998 = vmatpush1.msra.mxu0 0.0
      %1999 = vmatprep.subr.mxu0 0.0
      %2000 = vmatpush1.msra.mxu0 0.0
      %2001 = vmatprep.subr.mxu0 0.0
      %2002 = vmatpush1.msra.mxu0 0.0
      %2003 = vmatprep.subr.mxu0 0.0
      %2004 = vmatpush1.msra.mxu0 0.0
      %2005 = vmatprep.subr.mxu0 0.0
      %2006 = vmatpush1.msra.mxu0 0.0
      %2007 = vmatprep.subr.mxu0 0.0
      %2008 = vmatpush1.msra.mxu0 0.0
      %2009 = vmatprep.subr.mxu0 0.0
      %2010 = vmatpush1.msra.mxu0 0.0
      %2011 = vmatprep.subr.mxu0 0.0
      %2012 = vmatpush1.msra.mxu0 0.0
      %2013 = vmatprep.subr.mxu0 0.0
      %2014 = vmatpush1.msra.mxu0 0.0
      %2015 = vmatprep.subr.mxu0 0.0
      %2016 = vmatpush1.msra.mxu0 0.0
      %2017 = vmatprep.subr.mxu0 0.0
      %2018 = vmatpush1.msra.mxu0 0.0
      %2019 = vmatprep.subr.mxu0 0.0
      %2020 = vmatpush1.msra.mxu0 0.0
      %2021 = vmatprep.subr.mxu0 0.0
      %2022 = vmatpush1.msra.mxu0 0.0
      %2023 = vmatprep.subr.mxu0 0.0
      %2024 = vmatpush1.msra.mxu0 0.0
      %2025 = vmatprep.subr.mxu0 0.0
      %2026 = vmatpush1.msra.mxu0 0.0
      %2027 = vmatprep.subr.mxu0 0.0
      %2028 = vmatpush1.msra.mxu0 0.0
      %2029 = vmatprep.subr.mxu0 0.0
      %2030 = vmatpush1.msra.mxu0 0.0
      %2031 = vmatprep.subr.mxu0 0.0
      %2032 = vmatpush1.msra.mxu0 0.0
      %2033 = vmatprep.mubr.f32.mxu0 0.0
      %2034 = vmatmul.mubr.f32.gmra.mrb[0].mxu0 %v1961
      %v2035 = vpop.f32.mrb[0].mxu0
      %v2036 = vadd.f32 0.0, %v2035
      %v2037 = vpop.f32.mrb[0].mxu0
      %v2038 = vadd.f32 0.0, %v2037
      %2039 = vdwg.mxu0
      %v2040 = vadd.f32 %v1947, %v2036
      %v2041 = vadd.f32 %v1948, %v2038
      %v2043 = vsel %vm1695, %v1665, 0
      %v2045 = vsel %vm758, %v1659, 0
      %v2047 = vsel %vm758, %v1660, 0
      %2049 = vmatprep.subr.mxu0 %v2047
      %2050 = vmatpush1.msra.mxu0 %v2045
      %2051 = vmatprep.subr.mxu0 0.0
      %2052 = vmatpush1.msra.mxu0 0.0
      %2053 = vmatprep.subr.mxu0 0.0
      %2054 = vmatpush1.msra.mxu0 0.0
      %2055 = vmatprep.subr.mxu0 0.0
      %2056 = vmatpush1.msra.mxu0 0.0
      %2057 = vmatprep.subr.mxu0 0.0
      %2058 = vmatpush1.msra.mxu0 0.0
      %2059 = vmatprep.subr.mxu0 0.0
      %2060 = vmatpush1.msra.mxu0 0.0
      %2061 = vmatprep.subr.mxu0 0.0
      %2062 = vmatpush1.msra.mxu0 0.0
      %2063 = vmatprep.subr.mxu0 0.0
      %2064 = vmatpush1.msra.mxu0 0.0
      %2065 = vmatprep.subr.mxu0 0.0
      %2066 = vmatpush1.msra.mxu0 0.0
      %2067 = vmatprep.subr.mxu0 0.0
      %2068 = vmatpush1.msra.mxu0 0.0
      %2069 = vmatprep.subr.mxu0 0.0
      %2070 = vmatpush1.msra.mxu0 0.0
      %2071 = vmatprep.subr.mxu0 0.0
      %2072 = vmatpush1.msra.mxu0 0.0
      %2073 = vmatprep.subr.mxu0 0.0
      %2074 = vmatpush1.msra.mxu0 0.0
      %2075 = vmatprep.subr.mxu0 0.0
      %2076 = vmatpush1.msra.mxu0 0.0
      %2077 = vmatprep.subr.mxu0 0.0
      %2078 = vmatpush1.msra.mxu0 0.0
      %2079 = vmatprep.subr.mxu0 0.0
      %2080 = vmatpush1.msra.mxu0 0.0
      %2081 = vmatprep.subr.mxu0 0.0
      %2082 = vmatpush1.msra.mxu0 0.0
      %2083 = vmatprep.subr.mxu0 0.0
      %2084 = vmatpush1.msra.mxu0 0.0
      %2085 = vmatprep.subr.mxu0 0.0
      %2086 = vmatpush1.msra.mxu0 0.0
      %2087 = vmatprep.subr.mxu0 0.0
      %2088 = vmatpush1.msra.mxu0 0.0
      %2089 = vmatprep.subr.mxu0 0.0
      %2090 = vmatpush1.msra.mxu0 0.0
      %2091 = vmatprep.subr.mxu0 0.0
      %2092 = vmatpush1.msra.mxu0 0.0
      %2093 = vmatprep.subr.mxu0 0.0
      %2094 = vmatpush1.msra.mxu0 0.0
      %2095 = vmatprep.subr.mxu0 0.0
      %2096 = vmatpush1.msra.mxu0 0.0
      %2097 = vmatprep.subr.mxu0 0.0
      %2098 = vmatpush1.msra.mxu0 0.0
      %2099 = vmatprep.subr.mxu0 0.0
      %2100 = vmatpush1.msra.mxu0 0.0
      %2101 = vmatprep.subr.mxu0 0.0
      %2102 = vmatpush1.msra.mxu0 0.0
      %2103 = vmatprep.subr.mxu0 0.0
      %2104 = vmatpush1.msra.mxu0 0.0
      %2105 = vmatprep.subr.mxu0 0.0
      %2106 = vmatpush1.msra.mxu0 0.0
      %2107 = vmatprep.subr.mxu0 0.0
      %2108 = vmatpush1.msra.mxu0 0.0
      %2109 = vmatprep.subr.mxu0 0.0
      %2110 = vmatpush1.msra.mxu0 0.0
      %2111 = vmatprep.subr.mxu0 0.0
      %2112 = vmatpush1.msra.mxu0 0.0
      %2113 = vmatprep.mubr.f32.mxu0 0.0
      %2114 = vmatmul.mubr.f32.gmra.mrb[0].mxu0 %v2043
      %v2115 = vpop.f32.mrb[0].mxu0
      %v2116 = vadd.f32 0.0, %v2115
      %v2117 = vpop.f32.mrb[0].mxu0
      %v2118 = vadd.f32 0.0, %v2117
      %2119 = vdwg.mxu0
      %v2120 = vadd.f32 %v2040, %v2116
      %v2121 = vadd.f32 %v2041, %v2118
      %2122 = vrot.lane.b32.xlu0 %v1659, 127
      %v2123 = vpop.permute.xlu0 %2122
      %2124 = vrot.lane.b32.xlu0 %v1660, 127
      %v2125 = vpop.permute.xlu0 %2124
      %v2126 = vsel %vm1252, %v2123, %v2125
      %v2130 = vsel %vm1252, %v2125, %v2123
      %v2131 = vmul.f32 %v2126, %v1264
      %v2132 = vmul.f32 %v2130, %v1268
      %v2134 = vsel %vm1695, %v1666, 0
      %v2137 = vsel %vm758, %v2131, 0
      %v2140 = vsel %vm758, %v2132, 0
      %2142 = vmatprep.subr.mxu0 %v2140
      %2143 = vmatpush1.msra.mxu0 %v2137
      %2144 = vmatprep.subr.mxu0 0.0
      %2145 = vmatpush1.msra.mxu0 0.0
      %2146 = vmatprep.subr.mxu0 0.0
      %2147 = vmatpush1.msra.mxu0 0.0
      %2148 = vmatprep.subr.mxu0 0.0
      %2149 = vmatpush1.msra.mxu0 0.0
      %2150 = vmatprep.subr.mxu0 0.0
      %2151 = vmatpush1.msra.mxu0 0.0
      %2152 = vmatprep.subr.mxu0 0.0
      %2153 = vmatpush1.msra.mxu0 0.0
      %2154 = vmatprep.subr.mxu0 0.0
      %2155 = vmatpush1.msra.mxu0 0.0
      %2156 = vmatprep.subr.mxu0 0.0
      %2157 = vmatpush1.msra.mxu0 0.0
      %2158 = vmatprep.subr.mxu0 0.0
      %2159 = vmatpush1.msra.mxu0 0.0
      %2160 = vmatprep.subr.mxu0 0.0
      %2161 = vmatpush1.msra.mxu0 0.0
      %2162 = vmatprep.subr.mxu0 0.0
      %2163 = vmatpush1.msra.mxu0 0.0
      %2164 = vmatprep.subr.mxu0 0.0
      %2165 = vmatpush1.msra.mxu0 0.0
      %2166 = vmatprep.subr.mxu0 0.0
      %2167 = vmatpush1.msra.mxu0 0.0
      %2168 = vmatprep.subr.mxu0 0.0
      %2169 = vmatpush1.msra.mxu0 0.0
      %2170 = vmatprep.subr.mxu0 0.0
      %2171 = vmatpush1.msra.mxu0 0.0
      %2172 = vmatprep.subr.mxu0 0.0
      %2173 = vmatpush1.msra.mxu0 0.0
      %2174 = vmatprep.subr.mxu0 0.0
      %2175 = vmatpush1.msra.mxu0 0.0
      %2176 = vmatprep.subr.mxu0 0.0
      %2177 = vmatpush1.msra.mxu0 0.0
      %2178 = vmatprep.subr.mxu0 0.0
      %2179 = vmatpush1.msra.mxu0 0.0
      %2180 = vmatprep.subr.mxu0 0.0
      %2181 = vmatpush1.msra.mxu0 0.0
      %2182 = vmatprep.subr.mxu0 0.0
      %2183 = vmatpush1.msra.mxu0 0.0
      %2184 = vmatprep.subr.mxu0 0.0
      %2185 = vmatpush1.msra.mxu0 0.0
      %2186 = vmatprep.subr.mxu0 0.0
      %2187 = vmatpush1.msra.mxu0 0.0
      %2188 = vmatprep.subr.mxu0 0.0
      %2189 = vmatpush1.msra.mxu0 0.0
      %2190 = vmatprep.subr.mxu0 0.0
      %2191 = vmatpush1.msra.mxu0 0.0
      %2192 = vmatprep.subr.mxu0 0.0
      %2193 = vmatpush1.msra.mxu0 0.0
      %2194 = vmatprep.subr.mxu0 0.0
      %2195 = vmatpush1.msra.mxu0 0.0
      %2196 = vmatprep.subr.mxu0 0.0
      %2197 = vmatpush1.msra.mxu0 0.0
      %2198 = vmatprep.subr.mxu0 0.0
      %2199 = vmatpush1.msra.mxu0 0.0
      %2200 = vmatprep.subr.mxu0 0.0
      %2201 = vmatpush1.msra.mxu0 0.0
      %2202 = vmatprep.subr.mxu0 0.0
      %2203 = vmatpush1.msra.mxu0 0.0
      %2204 = vmatprep.subr.mxu0 0.0
      %2205 = vmatpush1.msra.mxu0 0.0
      %2206 = vmatprep.mubr.f32.mxu0 0.0
      %2207 = vmatmul.mubr.f32.gmra.mrb[0].mxu0 %v2134
      %v2208 = vpop.f32.mrb[0].mxu0
      %v2209 = vadd.f32 0.0, %v2208
      %v2210 = vpop.f32.mrb[0].mxu0
      %v2211 = vadd.f32 0.0, %v2210
      %2212 = vdwg.mxu0
      %v2213 = vadd.f32 %v2120, %v2209
      %v2214 = vadd.f32 %v2121, %v2211
      %2215 = vrot.lane.b32.xlu0 %v1659, 113
      %v2216 = vpop.permute.xlu0 %2215
      %2217 = vrot.lane.b32.xlu0 %v1660, 113
      %v2218 = vpop.permute.xlu0 %2217
      %v2219 = vsel %vm1353, %v2216, %v2218
      %v2223 = vsel %vm1353, %v2218, %v2216
      %v2224 = vmul.f32 %v2219, %v1365
      %v2225 = vmul.f32 %v2223, %v1369
      %v2227 = vsel %vm1695, %v1667, 0
      %v2230 = vsel %vm758, %v2224, 0
      %v2233 = vsel %vm758, %v2225, 0
      %2235 = vmatprep.subr.mxu0 %v2233
      %2236 = vmatpush1.msra.mxu0 %v2230
      %2237 = vmatprep.subr.mxu0 0.0
      %2238 = vmatpush1.msra.mxu0 0.0
      %2239 = vmatprep.subr.mxu0 0.0
      %2240 = vmatpush1.msra.mxu0 0.0
      %2241 = vmatprep.subr.mxu0 0.0
      %2242 = vmatpush1.msra.mxu0 0.0
      %2243 = vmatprep.subr.mxu0 0.0
      %2244 = vmatpush1.msra.mxu0 0.0
      %2245 = vmatprep.subr.mxu0 0.0
      %2246 = vmatpush1.msra.mxu0 0.0
      %2247 = vmatprep.subr.mxu0 0.0
      %2248 = vmatpush1.msra.mxu0 0.0
      %2249 = vmatprep.subr.mxu0 0.0
      %2250 = vmatpush1.msra.mxu0 0.0
      %2251 = vmatprep.subr.mxu0 0.0
      %2252 = vmatpush1.msra.mxu0 0.0
      %2253 = vmatprep.subr.mxu0 0.0
      %2254 = vmatpush1.msra.mxu0 0.0
      %2255 = vmatprep.subr.mxu0 0.0
      %2256 = vmatpush1.msra.mxu0 0.0
      %2257 = vmatprep.subr.mxu0 0.0
      %2258 = vmatpush1.msra.mxu0 0.0
      %2259 = vmatprep.subr.mxu0 0.0
      %2260 = vmatpush1.msra.mxu0 0.0
      %2261 = vmatprep.subr.mxu0 0.0
      %2262 = vmatpush1.msra.mxu0 0.0
      %2263 = vmatprep.subr.mxu0 0.0
      %2264 = vmatpush1.msra.mxu0 0.0
      %2265 = vmatprep.subr.mxu0 0.0
      %2266 = vmatpush1.msra.mxu0 0.0
      %2267 = vmatprep.subr.mxu0 0.0
      %2268 = vmatpush1.msra.mxu0 0.0
      %2269 = vmatprep.subr.mxu0 0.0
      %2270 = vmatpush1.msra.mxu0 0.0
      %2271 = vmatprep.subr.mxu0 0.0
      %2272 = vmatpush1.msra.mxu0 0.0
      %2273 = vmatprep.subr.mxu0 0.0
      %2274 = vmatpush1.msra.mxu0 0.0
      %2275 = vmatprep.subr.mxu0 0.0
      %2276 = vmatpush1.msra.mxu0 0.0
      %2277 = vmatprep.subr.mxu0 0.0
      %2278 = vmatpush1.msra.mxu0 0.0
      %2279 = vmatprep.subr.mxu0 0.0
      %2280 = vmatpush1.msra.mxu0 0.0
      %2281 = vmatprep.subr.mxu0 0.0
      %2282 = vmatpush1.msra.mxu0 0.0
      %2283 = vmatprep.subr.mxu0 0.0
      %2284 = vmatpush1.msra.mxu0 0.0
      %2285 = vmatprep.subr.mxu0 0.0
      %2286 = vmatpush1.msra.mxu0 0.0
      %2287 = vmatprep.subr.mxu0 0.0
      %2288 = vmatpush1.msra.mxu0 0.0
      %2289 = vmatprep.subr.mxu0 0.0
      %2290 = vmatpush1.msra.mxu0 0.0
      %2291 = vmatprep.subr.mxu0 0.0
      %2292 = vmatpush1.msra.mxu0 0.0
      %2293 = vmatprep.subr.mxu0 0.0
      %2294 = vmatpush1.msra.mxu0 0.0
      %2295 = vmatprep.subr.mxu0 0.0
      %2296 = vmatpush1.msra.mxu0 0.0
      %2297 = vmatprep.subr.mxu0 0.0
      %2298 = vmatpush1.msra.mxu0 0.0
      %2299 = vmatprep.mubr.f32.mxu0 0.0
      %2300 = vmatmul.mubr.f32.gmra.mrb[0].mxu0 %v2227
      %v2301 = vpop.f32.mrb[0].mxu0
      %v2302 = vadd.f32 0.0, %v2301
      %v2303 = vpop.f32.mrb[0].mxu0
      %v2304 = vadd.f32 0.0, %v2303
      %2305 = vdwg.mxu0
      %v2306 = vadd.f32 %v2213, %v2302
      %v2307 = vadd.f32 %v2214, %v2304
      %2308 = vrot.lane.b32.xlu0 %v1659, 112
      %v2309 = vpop.permute.xlu0 %2308
      %2310 = vrot.lane.b32.xlu0 %v1660, 112
      %v2311 = vpop.permute.xlu0 %2310
      %v2312 = vsel %vm1454, %v2309, %v2311
      %v2316 = vsel %vm1454, %v2311, %v2309
      %v2317 = vmul.f32 %v2312, %v1466
      %v2318 = vmul.f32 %v2316, %v1470
      %v2320 = vsel %vm1695, %v1668, 0
      %v2323 = vsel %vm758, %v2317, 0
      %v2326 = vsel %vm758, %v2318, 0
      %2328 = vmatprep.subr.mxu0 %v2326
      %2329 = vmatpush1.msra.mxu0 %v2323
      %2330 = vmatprep.subr.mxu0 0.0
      %2331 = vmatpush1.msra.mxu0 0.0
      %2332 = vmatprep.subr.mxu0 0.0
      %2333 = vmatpush1.msra.mxu0 0.0
      %2334 = vmatprep.subr.mxu0 0.0
      %2335 = vmatpush1.msra.mxu0 0.0
      %2336 = vmatprep.subr.mxu0 0.0
      %2337 = vmatpush1.msra.mxu0 0.0
      %2338 = vmatprep.subr.mxu0 0.0
      %2339 = vmatpush1.msra.mxu0 0.0
      %2340 = vmatprep.subr.mxu0 0.0
      %2341 = vmatpush1.msra.mxu0 0.0
      %2342 = vmatprep.subr.mxu0 0.0
      %2343 = vmatpush1.msra.mxu0 0.0
      %2344 = vmatprep.subr.mxu0 0.0
      %2345 = vmatpush1.msra.mxu0 0.0
      %2346 = vmatprep.subr.mxu0 0.0
      %2347 = vmatpush1.msra.mxu0 0.0
      %2348 = vmatprep.subr.mxu0 0.0
      %2349 = vmatpush1.msra.mxu0 0.0
      %2350 = vmatprep.subr.mxu0 0.0
      %2351 = vmatpush1.msra.mxu0 0.0
      %2352 = vmatprep.subr.mxu0 0.0
      %2353 = vmatpush1.msra.mxu0 0.0
      %2354 = vmatprep.subr.mxu0 0.0
      %2355 = vmatpush1.msra.mxu0 0.0
      %2356 = vmatprep.subr.mxu0 0.0
      %2357 = vmatpush1.msra.mxu0 0.0
      %2358 = vmatprep.subr.mxu0 0.0
      %2359 = vmatpush1.msra.mxu0 0.0
      %2360 = vmatprep.subr.mxu0 0.0
      %2361 = vmatpush1.msra.mxu0 0.0
      %2362 = vmatprep.subr.mxu0 0.0
      %2363 = vmatpush1.msra.mxu0 0.0
      %2364 = vmatprep.subr.mxu0 0.0
      %2365 = vmatpush1.msra.mxu0 0.0
      %2366 = vmatprep.subr.mxu0 0.0
      %2367 = vmatpush1.msra.mxu0 0.0
      %2368 = vmatprep.subr.mxu0 0.0
      %2369 = vmatpush1.msra.mxu0 0.0
      %2370 = vmatprep.subr.mxu0 0.0
      %2371 = vmatpush1.msra.mxu0 0.0
      %2372 = vmatprep.subr.mxu0 0.0
      %2373 = vmatpush1.msra.mxu0 0.0
      %2374 = vmatprep.subr.mxu0 0.0
      %2375 = vmatpush1.msra.mxu0 0.0
      %2376 = vmatprep.subr.mxu0 0.0
      %2377 = vmatpush1.msra.mxu0 0.0
      %2378 = vmatprep.subr.mxu0 0.0
      %2379 = vmatpush1.msra.mxu0 0.0
      %2380 = vmatprep.subr.mxu0 0.0
      %2381 = vmatpush1.msra.mxu0 0.0
      %2382 = vmatprep.subr.mxu0 0.0
      %2383 = vmatpush1.msra.mxu0 0.0
      %2384 = vmatprep.subr.mxu0 0.0
      %2385 = vmatpush1.msra.mxu0 0.0
      %2386 = vmatprep.subr.mxu0 0.0
      %2387 = vmatpush1.msra.mxu0 0.0
      %2388 = vmatprep.subr.mxu0 0.0
      %2389 = vmatpush1.msra.mxu0 0.0
      %2390 = vmatprep.subr.mxu0 0.0
      %2391 = vmatpush1.msra.mxu0 0.0
      %2392 = vmatprep.mubr.f32.mxu0 0.0
      %2393 = vmatmul.mubr.f32.gmra.mrb[0].mxu0 %v2320
      %v2394 = vpop.f32.mrb[0].mxu0
      %v2395 = vadd.f32 0.0, %v2394
      %v2396 = vpop.f32.mrb[0].mxu0
      %v2397 = vadd.f32 0.0, %v2396
      %2398 = vdwg.mxu0
      %v2399 = vadd.f32 %v2306, %v2395
      %v2400 = vadd.f32 %v2307, %v2397
      %2401 = vrot.lane.b32.xlu0 %v1659, 111
      %v2402 = vpop.permute.xlu0 %2401
      %2403 = vrot.lane.b32.xlu0 %v1660, 111
      %v2404 = vpop.permute.xlu0 %2403
      %v2405 = vsel %vm1555, %v2402, %v2404
      %v2409 = vsel %vm1555, %v2404, %v2402
      %v2410 = vmul.f32 %v2405, %v1567
      %v2411 = vmul.f32 %v2409, %v1571
      %v2413 = vsel %vm1695, %v1669, 0
      %v2416 = vsel %vm758, %v2410, 0
      %v2419 = vsel %vm758, %v2411, 0
      %2421 = vmatprep.subr.mxu0 %v2419
      %2422 = vmatpush1.msra.mxu0 %v2416
      %2423 = vmatprep.subr.mxu0 0.0
      %2424 = vmatpush1.msra.mxu0 0.0
      %2425 = vmatprep.subr.mxu0 0.0
      %2426 = vmatpush1.msra.mxu0 0.0
      %2427 = vmatprep.subr.mxu0 0.0
      %2428 = vmatpush1.msra.mxu0 0.0
      %2429 = vmatprep.subr.mxu0 0.0
      %2430 = vmatpush1.msra.mxu0 0.0
      %2431 = vmatprep.subr.mxu0 0.0
      %2432 = vmatpush1.msra.mxu0 0.0
      %2433 = vmatprep.subr.mxu0 0.0
      %2434 = vmatpush1.msra.mxu0 0.0
      %2435 = vmatprep.subr.mxu0 0.0
      %2436 = vmatpush1.msra.mxu0 0.0
      %2437 = vmatprep.subr.mxu0 0.0
      %2438 = vmatpush1.msra.mxu0 0.0
      %2439 = vmatprep.subr.mxu0 0.0
      %2440 = vmatpush1.msra.mxu0 0.0
      %2441 = vmatprep.subr.mxu0 0.0
      %2442 = vmatpush1.msra.mxu0 0.0
      %2443 = vmatprep.subr.mxu0 0.0
      %2444 = vmatpush1.msra.mxu0 0.0
      %2445 = vmatprep.subr.mxu0 0.0
      %2446 = vmatpush1.msra.mxu0 0.0
      %2447 = vmatprep.subr.mxu0 0.0
      %2448 = vmatpush1.msra.mxu0 0.0
      %2449 = vmatprep.subr.mxu0 0.0
      %2450 = vmatpush1.msra.mxu0 0.0
      %2451 = vmatprep.subr.mxu0 0.0
      %2452 = vmatpush1.msra.mxu0 0.0
      %2453 = vmatprep.subr.mxu0 0.0
      %2454 = vmatpush1.msra.mxu0 0.0
      %2455 = vmatprep.subr.mxu0 0.0
      %2456 = vmatpush1.msra.mxu0 0.0
      %2457 = vmatprep.subr.mxu0 0.0
      %2458 = vmatpush1.msra.mxu0 0.0
      %2459 = vmatprep.subr.mxu0 0.0
      %2460 = vmatpush1.msra.mxu0 0.0
      %2461 = vmatprep.subr.mxu0 0.0
      %2462 = vmatpush1.msra.mxu0 0.0
      %2463 = vmatprep.subr.mxu0 0.0
      %2464 = vmatpush1.msra.mxu0 0.0
      %2465 = vmatprep.subr.mxu0 0.0
      %2466 = vmatpush1.msra.mxu0 0.0
      %2467 = vmatprep.subr.mxu0 0.0
      %2468 = vmatpush1.msra.mxu0 0.0
      %2469 = vmatprep.subr.mxu0 0.0
      %2470 = vmatpush1.msra.mxu0 0.0
      %2471 = vmatprep.subr.mxu0 0.0
      %2472 = vmatpush1.msra.mxu0 0.0
      %2473 = vmatprep.subr.mxu0 0.0
      %2474 = vmatpush1.msra.mxu0 0.0
      %2475 = vmatprep.subr.mxu0 0.0
      %2476 = vmatpush1.msra.mxu0 0.0
      %2477 = vmatprep.subr.mxu0 0.0
      %2478 = vmatpush1.msra.mxu0 0.0
      %2479 = vmatprep.subr.mxu0 0.0
      %2480 = vmatpush1.msra.mxu0 0.0
      %2481 = vmatprep.subr.mxu0 0.0
      %2482 = vmatpush1.msra.mxu0 0.0
      %2483 = vmatprep.subr.mxu0 0.0
      %2484 = vmatpush1.msra.mxu0 0.0
      %2485 = vmatprep.mubr.f32.mxu0 0.0
      %2486 = vmatmul.mubr.f32.gmra.mrb[0].mxu0 %v2413
      %v2487 = vpop.f32.mrb[0].mxu0
      %v2488 = vadd.f32 0.0, %v2487
      %v2489 = vpop.f32.mrb[0].mxu0
      %v2490 = vadd.f32 0.0, %v2489
      %2491 = vdwg.mxu0
      %v2492 = vadd.f32 %v2399, %v2488
      %v2493 = vadd.f32 %v2400, %v2490
      %2495 = vset.pattern.permute.xlu0 0
      %2496 = vperm.xlu0 %2495, %v1670
      %v2497 = vpop.permute.xlu0 %2496
      %v2499 = vadd.f32 %v2492, %v2497
      %v2500 = vadd.f32 %v2493, %v2497
      %v2501 = vmax.f32 %v2499, 0.0
      %v2502 = vmax.f32 %v2500, 0.0
      %v2505 = vcombine.low %v2501, %v2502
      %2507 = vst [vmem:[%s379] sm:$0xff] %v2505
      %p2508 = scmp.lt.s32.totalorder %s21, 1
      %s2509 = scalar_select %p2508, %s21, 1
      %s2510 = smul.addr %s2509, 2
      %s2511 = smul.addr %s2510, 4
      %s2512 = scalar_lea.vmem %s10, %s2511
      // Predicated region
      $region61: #{unet_up_coord_forward.1} parent=59 // pred_check
        %p2513 = pneg %p259
      $region62: #{unet_up_coord_forward.1} parent=59 // pred_check_branch
        %2515 = sbr.rel (%p2513) target = $region64
      $region63: #{unet_up_coord_forward.1} parent=59 // pred_region
        _
      $region64: #{unet_up_coord_forward.1} parent=59 // pred_fallthru
        _
    $region60: #{unet_up_coord_forward.1} parent=5 // pred_fallthru
      _
    %p2516 = scmp.le.s32.totalorder 2, %s16
    // Predicated region
    $region65: #{unet_up_coord_forward.1} parent=5 // pred_check
      %p2517 = pneg %p2516
    $region66: #{unet_up_coord_forward.1} parent=5 // pred_check_branch
      %2519 = sbr.rel (%p2517) target = $region68
    $region67: #{unet_up_coord_forward.1} parent=5 // pred_region
      %s2520 = ssub.s32 %s16, 2
      // Predicated region
      $region69: #{unet_up_coord_forward.1} parent=67 // pred_check
        %p2521 = pneg %p265
      $region70: #{unet_up_coord_forward.1} parent=67 // pred_check_branch
        %2523 = sbr.rel (%p2521) target = $region72
      $region71: #{unet_up_coord_forward.1} parent=67 // pred_region
        %p2524 = scmp.lt.s32.totalorder %s22, 1
        %s2525 = scalar_select %p2524, %s22, 1
        %s2526 = smul.addr %s2525, 2
        %s2527 = smul.addr %s2526, 4
        %s2528 = scalar_lea.vmem %s10, %s2527
      $region72: #{unet_up_coord_forward.1} parent=67 // pred_fallthru
        _
    $region68: #{unet_up_coord_forward.1} parent=5 // pred_fallthru
      _
  $region6: #{unet_up_coord_forward.1} parent=0 // loop_footer
    %s20 = sadd.s32 1, %s16
  $region7: #{unet_up_coord_forward.1} parent=0 // loop_footer_branch
    %15 = sbr.rel target = $region3
  $region8: #{unet_up_coord_forward.1} parent=0 // loop_exit
    _

</llo_original>
